<compile_context>
chip_gen: v5e
topology: v5e:2x2
jax: 0.10.0
libtpu: 0.0.40
codegen_flags: <defaults>
</compile_context>

<pallas_src>
import functools

import jax
import jax.numpy as jnp
from jax.experimental import pallas as pl
from jax.experimental.pallas import tpu as pltpu


# ----------------------------- in-kernel helpers -----------------------------

def _layer_norm(x, g, b, eps=1e-5):
    mu = jnp.mean(x, axis=-1, keepdims=True)
    var = jnp.mean(jnp.square(x - mu), axis=-1, keepdims=True)
    return (x - mu) * jax.lax.rsqrt(var + eps) * g + b


def _gelu_tanh(x):
    # tanh-approx GELU, kept in f32 (v5e VPU/EUP have no bf16 path)
    return 0.5 * x * (1.0 + jnp.tanh(0.7978845608028654 * (x + 0.044715 * x * x * x)))


def _mha_concat(q_full, k_full, v_full, n_heads, dh, causal):
    """Multi-head attention on full-width projections.

    q_full: (Sq, H) f32 (scale already folded in), k_full/v_full: (Sk, H) f32.
    Heads are sliced from the full projections (the projection dots were done
    full-width on the MXU); per-head outputs are concatenated into (Sq, H) bf16
    so the caller can run ONE full-depth output-projection dot.
    """
    Sq, Sk = q_full.shape[0], k_full.shape[0]
    mask = None
    if causal:
        # Built once per attention; reused by every head (JAX does not CSE iota).
        rows = jax.lax.broadcasted_iota(jnp.int32, (Sq, Sk), 0)
        cols = jax.lax.broadcasted_iota(jnp.int32, (Sq, Sk), 1)
        mask = cols <= rows

    outs = []
    for h in range(n_heads):
        sl = slice(h * dh, (h + 1) * dh)
        q = q_full[:, sl].astype(jnp.bfloat16)
        k = k_full[:, sl].astype(jnp.bfloat16)
        v = v_full[:, sl].astype(jnp.bfloat16)

        # scores = q @ k^T (NT matmul, f32 accumulation)
        s = jax.lax.dot_general(q, k, (((1,), (1,)), ((), ())),
                                preferred_element_type=jnp.float32)     # (Sq, Sk)
        if causal:
            s = jnp.where(mask, s, -jnp.inf)

        m = jnp.max(s, axis=-1, keepdims=True)
        p = jnp.exp(s - m)
        l = jnp.sum(p, axis=-1, keepdims=True)
        pv = jnp.dot(p.astype(jnp.bfloat16), v, preferred_element_type=jnp.float32)
        pv = pv * pl.reciprocal(l, approx=True)                         # (Sq, dh)
        outs.append(pv.astype(jnp.bfloat16))
    return jnp.concatenate(outs, axis=-1)                               # (Sq, H)


# ----------------------------- fused kernels -----------------------------

def _decoder_block_xa_kernel(x_ref, xa_ref,
                             ln1g, ln1b, wqkv, bqkv, wo, bo,
                             ln2g, ln2b, cq_w, cq_b, ckv_w, ckv_b, co_w, co_b,
                             ln3g, ln3b, w1, b1, w2, b2,
                             o_ref, *, n_heads):
    H = x_ref.shape[-1]
    dh = H // n_heads
    x = x_ref[0].astype(jnp.float32)                                    # (S, H)

    # --- self-attention: LN1 + fused QKV + causal MHA + out-proj + residual ---
    xn = _layer_norm(x, ln1g[...], ln1b[...]).astype(jnp.bfloat16)
    qkv = jnp.dot(xn, wqkv[...], preferred_element_type=jnp.float32) + bqkv[...]
    att = _mha_concat(qkv[:, :H], qkv[:, H:2 * H], qkv[:, 2 * H:], n_heads, dh, True)
    x = x + jnp.dot(att, wo[...], preferred_element_type=jnp.float32) + bo[...]

    # --- cross-attention: LN2 + Q(x) / fused KV(xa) + MHA + out-proj + residual ---
    xn2 = _layer_norm(x, ln2g[...], ln2b[...]).astype(jnp.bfloat16)
    q = jnp.dot(xn2, cq_w[...], preferred_element_type=jnp.float32) + cq_b[...]
    xa = xa_ref[0].astype(jnp.bfloat16)                                 # (Sk, H)
    kv = jnp.dot(xa, ckv_w[...], preferred_element_type=jnp.float32) + ckv_b[...]
    att = _mha_concat(q, kv[:, :H], kv[:, H:], n_heads, dh, False)
    x = x + jnp.dot(att, co_w[...], preferred_element_type=jnp.float32) + co_b[...]

    # --- MLP: LN3 + fc1 + GELU + fc2 + residual ---
    xn3 = _layer_norm(x, ln3g[...], ln3b[...]).astype(jnp.bfloat16)
    h = jnp.dot(xn3, w1[...], preferred_element_type=jnp.float32) + b1[...]
    h = _gelu_tanh(h)                                                   # f32
    y = jnp.dot(h.astype(jnp.bfloat16), w2[...], preferred_element_type=jnp.float32) + b2[...]
    o_ref[0] = (x + y).astype(o_ref.dtype)


def _decoder_block_noxa_kernel(x_ref,
                               ln1g, ln1b, wqkv, bqkv, wo, bo,
                               cross_const,
                               ln3g, ln3b, w1, b1, w2, b2,
                               o_ref, *, n_heads):
    H = x_ref.shape[-1]
    dh = H // n_heads
    x = x_ref[0].astype(jnp.float32)                                    # (S, H)

    # --- self-attention ---
    xn = _layer_norm(x, ln1g[...], ln1b[...]).astype(jnp.bfloat16)
    qkv = jnp.dot(xn, wqkv[...], preferred_element_type=jnp.float32) + bqkv[...]
    att = _mha_concat(qkv[:, :H], qkv[:, H:2 * H], qkv[:, 2 * H:], n_heads, dh, True)
    x = x + jnp.dot(att, wo[...], preferred_element_type=jnp.float32) + bo[...]

    # --- cross-attention over xa == 0 reduces to a constant bias (v_bias @ Wo + bo) ---
    x = x + cross_const[...]

    # --- MLP ---
    xn3 = _layer_norm(x, ln3g[...], ln3b[...]).astype(jnp.bfloat16)
    h = jnp.dot(xn3, w1[...], preferred_element_type=jnp.float32) + b1[...]
    h = _gelu_tanh(h)
    y = jnp.dot(h.astype(jnp.bfloat16), w2[...], preferred_element_type=jnp.float32) + b2[...]
    o_ref[0] = (x + y).astype(o_ref.dtype)


def _ln_linear_kernel(x_ref, g_ref, b_ref, w_ref, bias_ref, o_ref):
    x = x_ref[...].astype(jnp.float32)                                  # (tm, H)
    xn = _layer_norm(x, g_ref[...], b_ref[...])
    y = jnp.dot(xn.astype(jnp.bfloat16), w_ref[...],
                preferred_element_type=jnp.float32) + bias_ref[...]
    o_ref[...] = y.astype(o_ref.dtype)


# ----------------------------- pallas_call wrappers -----------------------------

def _round_up(v, m):
    return ((v + m - 1) // m) * m


def decoder_block(x, blk, n_heads, xa=None):
    """One fused pre-LN Whisper decoder block: self-attn + cross-attn + MLP."""
    B, S, H = x.shape
    F = blk["fc1_w"].shape[1]
    vec = lambda n=H: pl.BlockSpec((1, n), lambda b: (0, 0))
    mat = lambda r, c: pl.BlockSpec((r, c), lambda b: (0, 0))
    xspec = pl.BlockSpec((1, S, H), lambda b: (b, 0, 0))

    if xa is not None:
        Sk = xa.shape[1]
        kernel = functools.partial(_decoder_block_xa_kernel, n_heads=n_heads)
        in_specs = [
            xspec,                                                # x
            pl.BlockSpec((1, Sk, H), lambda b: (b, 0, 0)),        # xa
            vec(), vec(),                                         # ln1 gamma / beta
            mat(H, 3 * H), vec(3 * H),                            # fused Wqkv, bias
            mat(H, H), vec(),                                     # Wo, bo
            vec(), vec(),                                         # ln2
            mat(H, H), vec(),                                     # cross Wq, bq
            mat(H, 2 * H), vec(2 * H),                            # cross fused Wkv, bias
            mat(H, H), vec(),                                     # cross Wo, bo
            vec(), vec(),                                         # ln3
            mat(H, F), vec(F),                                    # fc1
            mat(F, H), vec(),                                     # fc2
        ]
        args = (x, xa, blk["ln1_g"], blk["ln1_b"], blk["wqkv"], blk["bqkv"],
                blk["wo"], blk["bo"], blk["ln2_g"], blk["ln2_b"],
                blk["cq_w"], blk["cq_b"], blk["ckv_w"], blk["ckv_b"],
                blk["co_w"], blk["co_b"], blk["ln3_g"], blk["ln3_b"],
                blk["fc1_w"], blk["fc1_b"], blk["fc2_w"], blk["fc2_b"])
    else:
        # xa == 0: cross-attention output is the constant v_bias @ Wo + bo.
        cross_const = (jnp.dot(blk["ckv_b"][:, H:].astype(jnp.bfloat16), blk["co_w"],
                               preferred_element_type=jnp.float32) + blk["co_b"])
        kernel = functools.partial(_decoder_block_noxa_kernel, n_heads=n_heads)
        in_specs = [
            xspec,
            vec(), vec(),
            mat(H, 3 * H), vec(3 * H),
            mat(H, H), vec(),
            vec(),                                                # cross_const
            vec(), vec(),
            mat(H, F), vec(F),
            mat(F, H), vec(),
        ]
        args = (x, blk["ln1_g"], blk["ln1_b"], blk["wqkv"], blk["bqkv"],
                blk["wo"], blk["bo"], cross_const, blk["ln3_g"], blk["ln3_b"],
                blk["fc1_w"], blk["fc1_b"], blk["fc2_w"], blk["fc2_b"])

    return pl.pallas_call(
        kernel,
        out_shape=jax.ShapeDtypeStruct((B, S, H), x.dtype),
        grid=(B,),
        in_specs=in_specs,
        out_specs=xspec,
        compiler_params=pltpu.CompilerParams(dimension_semantics=("parallel",)),
    )(*args)


def ln_classifier(x2d, g, b, w, bias, *, tm_cap=256, tn_cap=512):
    """Fused final LayerNorm + classifier; M padded to the row tile, N tiled."""
    M, H = x2d.shape
    N = w.shape[1]                                  # already padded to a 128 multiple
    tm = min(tm_cap, _round_up(M, 8))
    m_pad = _round_up(M, tm)
    if m_pad != M:
        x2d = jnp.pad(x2d, ((0, m_pad - M), (0, 0)))
    tn = 128
    for cand in (tn_cap, 256, 128):
        if N % cand == 0:
            tn = cand
            break
    out = pl.pallas_call(
        _ln_linear_kernel,
        out_shape=jax.ShapeDtypeStruct((m_pad, N), jnp.float32),
        grid=(m_pad // tm, N // tn),
        in_specs=[
            pl.BlockSpec((tm, H), lambda i, j: (i, 0)),
            pl.BlockSpec((1, H), lambda i, j: (0, 0)),
            pl.BlockSpec((1, H), lambda i, j: (0, 0)),
            pl.BlockSpec((H, tn), lambda i, j: (0, j)),
            pl.BlockSpec((1, tn), lambda i, j: (0, j)),
        ],
        out_specs=pl.BlockSpec((tm, tn), lambda i, j: (i, j)),
        compiler_params=pltpu.CompilerParams(
            dimension_semantics=("parallel", "parallel")),
    )(x2d, g, b, w, bias)
    return out[:M]


# ----------------------------- model -----------------------------

def _forward(params, feature_inputs, label=None, *, n_heads, num_classes):
    """feature_inputs: (S, B, H) float32; label: optional (B, S) int32."""
    x = jnp.transpose(feature_inputs, (1, 0, 2)).astype(jnp.float32)   # (B, S, H)
    B, S, H = x.shape
    # bf16 residual stream between kernels; f32 statistics inside kernels.
    x = (x + params["pos_emb"][:S][None, :, :]).astype(jnp.bfloat16)

    if label is not None:
        xa = jnp.take(params["token_embedding"], label, axis=0).astype(jnp.bfloat16)
    else:
        xa = None                                                       # zeros path

    for blk in params["blocks"]:
        x = decoder_block(x, blk, n_heads, xa=xa)

    logits_pad = ln_classifier(x.reshape(B * S, H), params["ln_f_g"], params["ln_f_b"],
                               params["out_w"], params["out_b"])        # (B*S, 128-padded)
    return logits_pad[:, :num_classes].reshape(B, S, num_classes)


whisper_slr_forward = jax.jit(_forward, static_argnames=("n_heads", "num_classes"))


# ----------------------------- init -----------------------------

def init_params(key, hidden, n_heads, n_layers, num_classes, max_ctx):
    dh = hidden // n_heads
    scale = dh ** -0.5
    n_pad = _round_up(num_classes, 128)             # lane-dense classifier output
    keys = iter(jax.random.split(key, 4 + n_layers * 12))

    def dense(i, o):
        w = 0.02 * jax.random.normal(next(keys), (i, o), jnp.float32)
        b = jnp.zeros((1, o), jnp.float32)
        return w, b

    def ln():
        return jnp.ones((1, hidden), jnp.float32), jnp.zeros((1, hidden), jnp.float32)

    blocks = []
    for _ in range(n_layers):
        blk = {}
        # --- self-attention (1/sqrt(dh) folded into Q weight/bias at init) ---
        blk["ln1_g"], blk["ln1_b"] = ln()
        qw, qb = dense(hidden, hidden)
        kw, _ = dense(hidden, hidden)               # Whisper: key projection has no bias
        vw, vb = dense(hidden, hidden)
        ow, ob = dense(hidden, hidden)
        blk["wqkv"] = jnp.concatenate([qw * scale, kw, vw], axis=1).astype(jnp.bfloat16)
        blk["bqkv"] = jnp.concatenate([qb * scale, jnp.zeros_like(qb), vb], axis=1)
        blk["wo"], blk["bo"] = ow.astype(jnp.bfloat16), ob

        # --- cross-attention ---
        blk["ln2_g"], blk["ln2_b"] = ln()
        cqw, cqb = dense(hidden, hidden)
        ckw, _ = dense(hidden, hidden)
        cvw, cvb = dense(hidden, hidden)
        cow, cob = dense(hidden, hidden)
        blk["cq_w"] = (cqw * scale).astype(jnp.bfloat16)
        blk["cq_b"] = cqb * scale
        blk["ckv_w"] = jnp.concatenate([ckw, cvw], axis=1).astype(jnp.bfloat16)
        blk["ckv_b"] = jnp.concatenate([jnp.zeros_like(cqb), cvb], axis=1)
        blk["co_w"], blk["co_b"] = cow.astype(jnp.bfloat16), cob

        # --- MLP ---
        blk["ln3_g"], blk["ln3_b"] = ln()
        w1, b1 = dense(hidden, 4 * hidden)
        w2, b2 = dense(4 * hidden, hidden)
        blk["fc1_w"], blk["fc1_b"] = w1.astype(jnp.bfloat16), b1
        blk["fc2_w"], blk["fc2_b"] = w2.astype(jnp.bfloat16), b2
        blocks.append(blk)

    pos_emb = 0.02 * jax.random.normal(next(keys), (max_ctx, hidden), jnp.float32)
    tok_emb = 0.02 * jax.random.normal(next(keys), (num_classes, hidden), jnp.float32)
    ow, ob = dense(hidden, num_classes)
    out_w = jnp.zeros((hidden, n_pad), jnp.float32).at[:, :num_classes].set(ow).astype(jnp.bfloat16)
    out_b = jnp.zeros((1, n_pad), jnp.float32).at[:, :num_classes].set(ob)
    ln_f_g, ln_f_b = ln()

    return {
        "blocks": blocks,
        "pos_emb": pos_emb,
        "token_embedding": tok_emb,
        "ln_f_g": ln_f_g, "ln_f_b": ln_f_b,
        "out_w": out_w, "out_b": out_b,
    }


# ----------------------------- main -----------------------------

if __name__ == "__main__":
    S, B, H = 8, 2, 32          # seq, batch, hidden  (small synthetic dims)
    N_HEADS, N_LAYERS = 4, 2
    NUM_CLASSES = 16

    root = jax.random.PRNGKey(0)
    k_feat, k_lab, k_par = jax.random.split(root, 3)

    feature_inputs = jax.random.normal(k_feat, (S, B, H), jnp.float32)   # (S, B, H)
    label = jax.random.randint(k_lab, (B, S), 0, NUM_CLASSES, jnp.int32)
    params = init_params(k_par, H, N_HEADS, N_LAYERS, NUM_CLASSES, max_ctx=S)

    # label=None path (zeros cross-attention memory, as in the PyTorch forward;
    # cross-attention collapses to a precomputed constant bias)
    logits_none = whisper_slr_forward(params, feature_inputs, None,
                                      n_heads=N_HEADS, num_classes=NUM_CLASSES)
    # label path (token_embedding lookup feeds cross-attention)
    logits_lab = whisper_slr_forward(params, feature_inputs, label,
                                     n_heads=N_HEADS, num_classes=NUM_CLASSES)

    jax.block_until_ready(logits_none)
    jax.block_until_ready(logits_lab)

    assert logits_none.shape == (B, S, NUM_CLASSES), logits_none.shape
    assert logits_lab.shape == (B, S, NUM_CLASSES), logits_lab.shape
    assert jnp.all(jnp.isfinite(logits_none)) and jnp.all(jnp.isfinite(logits_lab))

    print("KERNEL_OK")
</pallas_src>

<mosaic_0001>
module attributes {stable_mosaic.version = 11 : i64} {
  func.func @_ln_linear_kernel(%arg0: i32, %arg1: i32, %arg2: memref<16x32xbf16, #tpu.memory_space<vmem>>, %arg3: memref<1x32xf32, #tpu.memory_space<vmem>>, %arg4: memref<1x32xf32, #tpu.memory_space<vmem>>, %arg5: memref<32x128xbf16, #tpu.memory_space<vmem>>, %arg6: memref<1x128xf32, #tpu.memory_space<vmem>>, %arg7: memref<16x128xf32, #tpu.memory_space<vmem>>) attributes {dimension_semantics = [#tpu.dimension_semantics<parallel>, #tpu.dimension_semantics<parallel>], iteration_bounds = array<i64: 1, 1>, scalar_prefetch = 0 : i64, scratch_operands = 0 : i64, tpu.core_type = #tpu.core_type<tc>, window_params = [{transform_indices = @transform_0, window_bounds = array<i64: 16, 32>}, {pipeline_mode = #tpu.pipeline_mode<synchronous>, transform_indices = @transform_1, window_bounds = array<i64: 1, 32>}, {pipeline_mode = #tpu.pipeline_mode<synchronous>, transform_indices = @transform_2, window_bounds = array<i64: 1, 32>}, {transform_indices = @transform_3, window_bounds = array<i64: 32, 128>}, {transform_indices = @transform_4, window_bounds = array<i64: 1, 128>}, {transform_indices = @transform_5, window_bounds = array<i64: 16, 128>}]} {
    %c0 = arith.constant 0 : index
    %c0_0 = arith.constant 0 : index
    %0 = vector.load %arg2[%c0, %c0_0] : memref<16x32xbf16, #tpu.memory_space<vmem>>, vector<16x32xbf16>
    %1 = arith.extf %0 : vector<16x32xbf16> to vector<16x32xf32>
    %c0_1 = arith.constant 0 : index
    %c0_2 = arith.constant 0 : index
    %2 = vector.load %arg3[%c0_1, %c0_2] : memref<1x32xf32, #tpu.memory_space<vmem>>, vector<1x32xf32>
    %c0_3 = arith.constant 0 : index
    %c0_4 = arith.constant 0 : index
    %3 = vector.load %arg4[%c0_3, %c0_4] : memref<1x32xf32, #tpu.memory_space<vmem>>, vector<1x32xf32>
    %cst = arith.constant dense<0.000000e+00> : vector<16xf32>
    %4 = vector.multi_reduction <add>, %1, %cst [1] : vector<16x32xf32> to vector<16xf32>
    %5 = vector.shape_cast %4 : vector<16xf32> to vector<16x1xf32>
    %cst_5 = arith.constant 3.200000e+01 : f32
    %6 = vector.broadcast %cst_5 : f32 to vector<16x1xf32>
    %7 = arith.divf %5, %6 : vector<16x1xf32>
    %8 = vector.broadcast %7 : vector<16x1xf32> to vector<16x32xf32>
    %9 = arith.subf %1, %8 : vector<16x32xf32>
    %10 = arith.mulf %9, %9 : vector<16x32xf32>
    %cst_6 = arith.constant dense<0.000000e+00> : vector<16xf32>
    %11 = vector.multi_reduction <add>, %10, %cst_6 [1] : vector<16x32xf32> to vector<16xf32>
    %12 = vector.shape_cast %11 : vector<16xf32> to vector<16x1xf32>
    %cst_7 = arith.constant 3.200000e+01 : f32
    %13 = vector.broadcast %cst_7 : f32 to vector<16x1xf32>
    %14 = arith.divf %12, %13 : vector<16x1xf32>
    %15 = vector.broadcast %7 : vector<16x1xf32> to vector<16x32xf32>
    %16 = arith.subf %1, %15 : vector<16x32xf32>
    %cst_8 = arith.constant 9.99999974E-6 : f32
    %17 = vector.broadcast %cst_8 : f32 to vector<16x1xf32>
    %18 = arith.addf %14, %17 : vector<16x1xf32>
    %19 = math.rsqrt %18 : vector<16x1xf32>
    %20 = vector.broadcast %19 : vector<16x1xf32> to vector<16x32xf32>
    %21 = arith.mulf %16, %20 : vector<16x32xf32>
    %22 = vector.broadcast %2 : vector<1x32xf32> to vector<16x32xf32>
    %23 = arith.mulf %21, %22 : vector<16x32xf32>
    %24 = vector.broadcast %3 : vector<1x32xf32> to vector<16x32xf32>
    %25 = arith.addf %23, %24 : vector<16x32xf32>
    %26 = arith.truncf %25 : vector<16x32xf32> to vector<16x32xbf16>
    %c0_9 = arith.constant 0 : index
    %c0_10 = arith.constant 0 : index
    %27 = vector.load %arg5[%c0_9, %c0_10] : memref<32x128xbf16, #tpu.memory_space<vmem>>, vector<32x128xbf16>
    %cst_11 = arith.constant dense<0.000000e+00> : vector<16x128xf32>
    %28 = tpu.matmul %26, %27, %cst_11 {dimension_numbers = #tpu.dot_dimension_numbers<[1], [0], [0], [1], [0, 0, 1, 1], [], []>} : vector<16x32xbf16>, vector<32x128xbf16>, vector<16x128xf32> -> vector<16x128xf32>
    %c0_12 = arith.constant 0 : index
    %c0_13 = arith.constant 0 : index
    %29 = vector.load %arg6[%c0_12, %c0_13] : memref<1x128xf32, #tpu.memory_space<vmem>>, vector<1x128xf32>
    %30 = vector.broadcast %29 : vector<1x128xf32> to vector<16x128xf32>
    %31 = arith.addf %28, %30 : vector<16x128xf32>
    %c0_14 = arith.constant 0 : index
    %c0_15 = arith.constant 0 : index
    %32 = vector.load %arg7[%c0_14, %c0_15] : memref<16x128xf32, #tpu.memory_space<vmem>>, vector<16x128xf32>
    tpu.vector_store %arg7[%c0_14, %c0_15], %31 {strides = array<i32>} : memref<16x128xf32, #tpu.memory_space<vmem>>, vector<16x128xf32>,
    return
  }
  func.func @transform_0(%arg0: i32, %arg1: i32) -> (i32, i32) {
    %c0_i32 = arith.constant 0 : i32
    %c0_i32_0 = arith.constant 0 : i32
    return %arg0, %c0_i32 : i32, i32
  }
  func.func @transform_1(%arg0: i32, %arg1: i32) -> (i32, i32) {
    %c0_i32 = arith.constant 0 : i32
    %c0_i32_0 = arith.constant 0 : i32
    %c0_i32_1 = arith.constant 0 : i32
    return %c0_i32, %c0_i32_0 : i32, i32
  }
  func.func @transform_2(%arg0: i32, %arg1: i32) -> (i32, i32) {
    %c0_i32 = arith.constant 0 : i32
    %c0_i32_0 = arith.constant 0 : i32
    %c0_i32_1 = arith.constant 0 : i32
    return %c0_i32, %c0_i32_0 : i32, i32
  }
  func.func @transform_3(%arg0: i32, %arg1: i32) -> (i32, i32) {
    %c0_i32 = arith.constant 0 : i32
    %c0_i32_0 = arith.constant 0 : i32
    return %c0_i32, %arg1 : i32, i32
  }
  func.func @transform_4(%arg0: i32, %arg1: i32) -> (i32, i32) {
    %c0_i32 = arith.constant 0 : i32
    %c0_i32_0 = arith.constant 0 : i32
    return %c0_i32, %arg1 : i32, i32
  }
  func.func @transform_5(%arg0: i32, %arg1: i32) -> (i32, i32) {
    %c0_i32 = arith.constant 0 : i32
    return %arg0, %arg1 : i32, i32
  }
}

module attributes {stable_mosaic.version = 11 : i64} {
  func.func @_decoder_block_noxa_kernel(%arg0: i32, %arg1: memref<1x8x32xbf16, #tpu.memory_space<vmem>>, %arg2: memref<1x32xf32, #tpu.memory_space<vmem>>, %arg3: memref<1x32xf32, #tpu.memory_space<vmem>>, %arg4: memref<32x96xbf16, #tpu.memory_space<vmem>>, %arg5: memref<1x96xf32, #tpu.memory_space<vmem>>, %arg6: memref<32x32xbf16, #tpu.memory_space<vmem>>, %arg7: memref<1x32xf32, #tpu.memory_space<vmem>>, %arg8: memref<1x32xf32, #tpu.memory_space<vmem>>, %arg9: memref<1x32xf32, #tpu.memory_space<vmem>>, %arg10: memref<1x32xf32, #tpu.memory_space<vmem>>, %arg11: memref<32x128xbf16, #tpu.memory_space<vmem>>, %arg12: memref<1x128xf32, #tpu.memory_space<vmem>>, %arg13: memref<128x32xbf16, #tpu.memory_space<vmem>>, %arg14: memref<1x32xf32, #tpu.memory_space<vmem>>, %arg15: memref<1x8x32xbf16, #tpu.memory_space<vmem>>) attributes {dimension_semantics = [#tpu.dimension_semantics<parallel>], iteration_bounds = array<i64: 2>, scalar_prefetch = 0 : i64, scratch_operands = 0 : i64, tpu.core_type = #tpu.core_type<tc>, window_params = [{transform_indices = @transform_0, window_bounds = array<i64: 1, 8, 32>}, {pipeline_mode = #tpu.pipeline_mode<synchronous>, transform_indices = @transform_1, window_bounds = array<i64: 1, 32>}, {pipeline_mode = #tpu.pipeline_mode<synchronous>, transform_indices = @transform_2, window_bounds = array<i64: 1, 32>}, {pipeline_mode = #tpu.pipeline_mode<synchronous>, transform_indices = @transform_3, window_bounds = array<i64: 32, 96>}, {pipeline_mode = #tpu.pipeline_mode<synchronous>, transform_indices = @transform_4, window_bounds = array<i64: 1, 96>}, {pipeline_mode = #tpu.pipeline_mode<synchronous>, transform_indices = @transform_5, window_bounds = array<i64: 32, 32>}, {pipeline_mode = #tpu.pipeline_mode<synchronous>, transform_indices = @transform_6, window_bounds = array<i64: 1, 32>}, {pipeline_mode = #tpu.pipeline_mode<synchronous>, transform_indices = @transform_7, window_bounds = array<i64: 1, 32>}, {pipeline_mode = #tpu.pipeline_mode<synchronous>, transform_indices = @transform_8, window_bounds = array<i64: 1, 32>}, {pipeline_mode = #tpu.pipeline_mode<synchronous>, transform_indices = @transform_9, window_bounds = array<i64: 1, 32>}, {pipeline_mode = #tpu.pipeline_mode<synchronous>, transform_indices = @transform_10, window_bounds = array<i64: 32, 128>}, {pipeline_mode = #tpu.pipeline_mode<synchronous>, transform_indices = @transform_11, window_bounds = array<i64: 1, 128>}, {pipeline_mode = #tpu.pipeline_mode<synchronous>, transform_indices = @transform_12, window_bounds = array<i64: 128, 32>}, {pipeline_mode = #tpu.pipeline_mode<synchronous>, transform_indices = @transform_13, window_bounds = array<i64: 1, 32>}, {transform_indices = @transform_14, window_bounds = array<i64: 1, 8, 32>}]} {
    %c0 = arith.constant 0 : index
    %c0_0 = arith.constant 0 : index
    %c0_1 = arith.constant 0 : index
    %0 = vector.load %arg1[%c0, %c0_0, %c0_1] : memref<1x8x32xbf16, #tpu.memory_space<vmem>>, vector<1x8x32xbf16>
    %1 = vector.shape_cast %0 : vector<1x8x32xbf16> to vector<8x32xbf16>
    %2 = arith.extf %1 : vector<8x32xbf16> to vector<8x32xf32>
    %c0_2 = arith.constant 0 : index
    %c0_3 = arith.constant 0 : index
    %3 = vector.load %arg2[%c0_2, %c0_3] : memref<1x32xf32, #tpu.memory_space<vmem>>, vector<1x32xf32>
    %c0_4 = arith.constant 0 : index
    %c0_5 = arith.constant 0 : index
    %4 = vector.load %arg3[%c0_4, %c0_5] : memref<1x32xf32, #tpu.memory_space<vmem>>, vector<1x32xf32>
    %cst = arith.constant dense<0.000000e+00> : vector<8xf32>
    %5 = vector.multi_reduction <add>, %2, %cst [1] : vector<8x32xf32> to vector<8xf32>
    %6 = vector.shape_cast %5 : vector<8xf32> to vector<8x1xf32>
    %cst_6 = arith.constant 3.200000e+01 : f32
    %7 = vector.broadcast %cst_6 : f32 to vector<8x1xf32>
    %8 = arith.divf %6, %7 : vector<8x1xf32>
    %9 = vector.broadcast %8 : vector<8x1xf32> to vector<8x32xf32>
    %10 = arith.subf %2, %9 : vector<8x32xf32>
    %11 = arith.mulf %10, %10 : vector<8x32xf32>
    %cst_7 = arith.constant dense<0.000000e+00> : vector<8xf32>
    %12 = vector.multi_reduction <add>, %11, %cst_7 [1] : vector<8x32xf32> to vector<8xf32>
    %13 = vector.shape_cast %12 : vector<8xf32> to vector<8x1xf32>
    %cst_8 = arith.constant 3.200000e+01 : f32
    %14 = vector.broadcast %cst_8 : f32 to vector<8x1xf32>
    %15 = arith.divf %13, %14 : vector<8x1xf32>
    %16 = vector.broadcast %8 : vector<8x1xf32> to vector<8x32xf32>
    %17 = arith.subf %2, %16 : vector<8x32xf32>
    %cst_9 = arith.constant 9.99999974E-6 : f32
    %18 = vector.broadcast %cst_9 : f32 to vector<8x1xf32>
    %19 = arith.addf %15, %18 : vector<8x1xf32>
    %20 = math.rsqrt %19 : vector<8x1xf32>
    %21 = vector.broadcast %20 : vector<8x1xf32> to vector<8x32xf32>
    %22 = arith.mulf %17, %21 : vector<8x32xf32>
    %23 = vector.broadcast %3 : vector<1x32xf32> to vector<8x32xf32>
    %24 = arith.mulf %22, %23 : vector<8x32xf32>
    %25 = vector.broadcast %4 : vector<1x32xf32> to vector<8x32xf32>
    %26 = arith.addf %24, %25 : vector<8x32xf32>
    %27 = arith.truncf %26 : vector<8x32xf32> to vector<8x32xbf16>
    %c0_10 = arith.constant 0 : index
    %c0_11 = arith.constant 0 : index
    %28 = vector.load %arg4[%c0_10, %c0_11] : memref<32x96xbf16, #tpu.memory_space<vmem>>, vector<32x96xbf16>
    %cst_12 = arith.constant dense<0.000000e+00> : vector<8x96xf32>
    %29 = tpu.matmul %27, %28, %cst_12 {dimension_numbers = #tpu.dot_dimension_numbers<[1], [0], [0], [1], [0, 0, 1, 1], [], []>} : vector<8x32xbf16>, vector<32x96xbf16>, vector<8x96xf32> -> vector<8x96xf32>
    %c0_13 = arith.constant 0 : index
    %c0_14 = arith.constant 0 : index
    %30 = vector.load %arg5[%c0_13, %c0_14] : memref<1x96xf32, #tpu.memory_space<vmem>>, vector<1x96xf32>
    %31 = vector.broadcast %30 : vector<1x96xf32> to vector<8x96xf32>
    %32 = arith.addf %29, %31 : vector<8x96xf32>
    %33 = vector.extract_strided_slice %32 {offsets = [0, 0], sizes = [8, 32], strides = [1, 1]} : vector<8x96xf32> to vector<8x32xf32>
    %34 = vector.extract_strided_slice %32 {offsets = [0, 32], sizes = [8, 32], strides = [1, 1]} : vector<8x96xf32> to vector<8x32xf32>
    %35 = vector.extract_strided_slice %32 {offsets = [0, 64], sizes = [8, 32], strides = [1, 1]} : vector<8x96xf32> to vector<8x32xf32>
    %36 = tpu.iota {dimensions = array<i32: 0>} : vector<8x8xi32>
    %37 = tpu.iota {dimensions = array<i32: 1>} : vector<8x8xi32>
    %38 = arith.cmpi sle, %37, %36 : vector<8x8xi32>
    %39 = vector.extract_strided_slice %33 {offsets = [0, 0], sizes = [8, 8], strides = [1, 1]} : vector<8x32xf32> to vector<8x8xf32>
    %40 = arith.truncf %39 : vector<8x8xf32> to vector<8x8xbf16>
    %41 = vector.extract_strided_slice %34 {offsets = [0, 0], sizes = [8, 8], strides = [1, 1]} : vector<8x32xf32> to vector<8x8xf32>
    %42 = arith.truncf %41 : vector<8x8xf32> to vector<8x8xbf16>
    %43 = vector.extract_strided_slice %35 {offsets = [0, 0], sizes = [8, 8], strides = [1, 1]} : vector<8x32xf32> to vector<8x8xf32>
    %44 = arith.truncf %43 : vector<8x8xf32> to vector<8x8xbf16>
    %cst_15 = arith.constant dense<0.000000e+00> : vector<8x8xf32>
    %45 = tpu.matmul %40, %42, %cst_15 {dimension_numbers = #tpu.dot_dimension_numbers<[1], [1], [0], [0], [0, 0, 1, 0], [], []>} : vector<8x8xbf16>, vector<8x8xbf16>, vector<8x8xf32> -> vector<8x8xf32>
    %cst_16 = arith.constant 0xFF800000 : f32
    %46 = vector.broadcast %cst_16 : f32 to vector<8x8xf32>
    %47 = arith.select %38, %45, %46 : vector<8x8xi1>, vector<8x8xf32>
    %cst_17 = arith.constant dense<0xFF800000> : vector<8xf32>
    %48 = vector.multi_reduction <maximumf>, %47, %cst_17 [1] : vector<8x8xf32> to vector<8xf32>
    %49 = vector.shape_cast %48 : vector<8xf32> to vector<8x1xf32>
    %50 = vector.broadcast %49 : vector<8x1xf32> to vector<8x8xf32>
    %51 = arith.subf %47, %50 : vector<8x8xf32>
    %52 = math.exp %51 : vector<8x8xf32>
    %cst_18 = arith.constant dense<0.000000e+00> : vector<8xf32>
    %53 = vector.multi_reduction <add>, %52, %cst_18 [1] : vector<8x8xf32> to vector<8xf32>
    %54 = vector.shape_cast %53 : vector<8xf32> to vector<8x1xf32>
    %55 = arith.truncf %52 : vector<8x8xf32> to vector<8x8xbf16>
    %cst_19 = arith.constant dense<0.000000e+00> : vector<8x8xf32>
    %56 = tpu.matmul %55, %44, %cst_19 {dimension_numbers = #tpu.dot_dimension_numbers<[1], [0], [0], [1], [0, 0, 1, 1], [], []>} : vector<8x8xbf16>, vector<8x8xbf16>, vector<8x8xf32> -> vector<8x8xf32>
    %57 = tpu.reciprocal %54 {approx = true} : vector<8x1xf32> -> vector<8x1xf32>
    %58 = vector.broadcast %57 : vector<8x1xf32> to vector<8x8xf32>
    %59 = arith.mulf %56, %58 : vector<8x8xf32>
    %60 = arith.truncf %59 : vector<8x8xf32> to vector<8x8xbf16>
    %61 = vector.extract_strided_slice %33 {offsets = [0, 8], sizes = [8, 8], strides = [1, 1]} : vector<8x32xf32> to vector<8x8xf32>
    %62 = arith.truncf %61 : vector<8x8xf32> to vector<8x8xbf16>
    %63 = vector.extract_strided_slice %34 {offsets = [0, 8], sizes = [8, 8], strides = [1, 1]} : vector<8x32xf32> to vector<8x8xf32>
    %64 = arith.truncf %63 : vector<8x8xf32> to vector<8x8xbf16>
    %65 = vector.extract_strided_slice %35 {offsets = [0, 8], sizes = [8, 8], strides = [1, 1]} : vector<8x32xf32> to vector<8x8xf32>
    %66 = arith.truncf %65 : vector<8x8xf32> to vector<8x8xbf16>
    %cst_20 = arith.constant dense<0.000000e+00> : vector<8x8xf32>
    %67 = tpu.matmul %62, %64, %cst_20 {dimension_numbers = #tpu.dot_dimension_numbers<[1], [1], [0], [0], [0, 0, 1, 0], [], []>} : vector<8x8xbf16>, vector<8x8xbf16>, vector<8x8xf32> -> vector<8x8xf32>
    %cst_21 = arith.constant 0xFF800000 : f32
    %68 = vector.broadcast %cst_21 : f32 to vector<8x8xf32>
    %69 = arith.select %38, %67, %68 : vector<8x8xi1>, vector<8x8xf32>
    %cst_22 = arith.constant dense<0xFF800000> : vector<8xf32>
    %70 = vector.multi_reduction <maximumf>, %69, %cst_22 [1] : vector<8x8xf32> to vector<8xf32>
    %71 = vector.shape_cast %70 : vector<8xf32> to vector<8x1xf32>
    %72 = vector.broadcast %71 : vector<8x1xf32> to vector<8x8xf32>
    %73 = arith.subf %69, %72 : vector<8x8xf32>
    %74 = math.exp %73 : vector<8x8xf32>
    %cst_23 = arith.constant dense<0.000000e+00> : vector<8xf32>
    %75 = vector.multi_reduction <add>, %74, %cst_23 [1] : vector<8x8xf32> to vector<8xf32>
    %76 = vector.shape_cast %75 : vector<8xf32> to vector<8x1xf32>
    %77 = arith.truncf %74 : vector<8x8xf32> to vector<8x8xbf16>
    %cst_24 = arith.constant dense<0.000000e+00> : vector<8x8xf32>
    %78 = tpu.matmul %77, %66, %cst_24 {dimension_numbers = #tpu.dot_dimension_numbers<[1], [0], [0], [1], [0, 0, 1, 1], [], []>} : vector<8x8xbf16>, vector<8x8xbf16>, vector<8x8xf32> -> vector<8x8xf32>
    %79 = tpu.reciprocal %76 {approx = true} : vector<8x1xf32> -> vector<8x1xf32>
    %80 = vector.broadcast %79 : vector<8x1xf32> to vector<8x8xf32>
    %81 = arith.mulf %78, %80 : vector<8x8xf32>
    %82 = arith.truncf %81 : vector<8x8xf32> to vector<8x8xbf16>
    %83 = vector.extract_strided_slice %33 {offsets = [0, 16], sizes = [8, 8], strides = [1, 1]} : vector<8x32xf32> to vector<8x8xf32>
    %84 = arith.truncf %83 : vector<8x8xf32> to vector<8x8xbf16>
    %85 = vector.extract_strided_slice %34 {offsets = [0, 16], sizes = [8, 8], strides = [1, 1]} : vector<8x32xf32> to vector<8x8xf32>
    %86 = arith.truncf %85 : vector<8x8xf32> to vector<8x8xbf16>
    %87 = vector.extract_strided_slice %35 {offsets = [0, 16], sizes = [8, 8], strides = [1, 1]} : vector<8x32xf32> to vector<8x8xf32>
    %88 = arith.truncf %87 : vector<8x8xf32> to vector<8x8xbf16>
    %cst_25 = arith.constant dense<0.000000e+00> : vector<8x8xf32>
    %89 = tpu.matmul %84, %86, %cst_25 {dimension_numbers = #tpu.dot_dimension_numbers<[1], [1], [0], [0], [0, 0, 1, 0], [], []>} : vector<8x8xbf16>, vector<8x8xbf16>, vector<8x8xf32> -> vector<8x8xf32>
    %cst_26 = arith.constant 0xFF800000 : f32
    %90 = vector.broadcast %cst_26 : f32 to vector<8x8xf32>
    %91 = arith.select %38, %89, %90 : vector<8x8xi1>, vector<8x8xf32>
    %cst_27 = arith.constant dense<0xFF800000> : vector<8xf32>
    %92 = vector.multi_reduction <maximumf>, %91, %cst_27 [1] : vector<8x8xf32> to vector<8xf32>
    %93 = vector.shape_cast %92 : vector<8xf32> to vector<8x1xf32>
    %94 = vector.broadcast %93 : vector<8x1xf32> to vector<8x8xf32>
    %95 = arith.subf %91, %94 : vector<8x8xf32>
    %96 = math.exp %95 : vector<8x8xf32>
    %cst_28 = arith.constant dense<0.000000e+00> : vector<8xf32>
    %97 = vector.multi_reduction <add>, %96, %cst_28 [1] : vector<8x8xf32> to vector<8xf32>
    %98 = vector.shape_cast %97 : vector<8xf32> to vector<8x1xf32>
    %99 = arith.truncf %96 : vector<8x8xf32> to vector<8x8xbf16>
    %cst_29 = arith.constant dense<0.000000e+00> : vector<8x8xf32>
    %100 = tpu.matmul %99, %88, %cst_29 {dimension_numbers = #tpu.dot_dimension_numbers<[1], [0], [0], [1], [0, 0, 1, 1], [], []>} : vector<8x8xbf16>, vector<8x8xbf16>, vector<8x8xf32> -> vector<8x8xf32>
    %101 = tpu.reciprocal %98 {approx = true} : vector<8x1xf32> -> vector<8x1xf32>
    %102 = vector.broadcast %101 : vector<8x1xf32> to vector<8x8xf32>
    %103 = arith.mulf %100, %102 : vector<8x8xf32>
    %104 = arith.truncf %103 : vector<8x8xf32> to vector<8x8xbf16>
    %105 = vector.extract_strided_slice %33 {offsets = [0, 24], sizes = [8, 8], strides = [1, 1]} : vector<8x32xf32> to vector<8x8xf32>
    %106 = arith.truncf %105 : vector<8x8xf32> to vector<8x8xbf16>
    %107 = vector.extract_strided_slice %34 {offsets = [0, 24], sizes = [8, 8], strides = [1, 1]} : vector<8x32xf32> to vector<8x8xf32>
    %108 = arith.truncf %107 : vector<8x8xf32> to vector<8x8xbf16>
    %109 = vector.extract_strided_slice %35 {offsets = [0, 24], sizes = [8, 8], strides = [1, 1]} : vector<8x32xf32> to vector<8x8xf32>
    %110 = arith.truncf %109 : vector<8x8xf32> to vector<8x8xbf16>
    %cst_30 = arith.constant dense<0.000000e+00> : vector<8x8xf32>
    %111 = tpu.matmul %106, %108, %cst_30 {dimension_numbers = #tpu.dot_dimension_numbers<[1], [1], [0], [0], [0, 0, 1, 0], [], []>} : vector<8x8xbf16>, vector<8x8xbf16>, vector<8x8xf32> -> vector<8x8xf32>
    %cst_31 = arith.constant 0xFF800000 : f32
    %112 = vector.broadcast %cst_31 : f32 to vector<8x8xf32>
    %113 = arith.select %38, %111, %112 : vector<8x8xi1>, vector<8x8xf32>
    %cst_32 = arith.constant dense<0xFF800000> : vector<8xf32>
    %114 = vector.multi_reduction <maximumf>, %113, %cst_32 [1] : vector<8x8xf32> to vector<8xf32>
    %115 = vector.shape_cast %114 : vector<8xf32> to vector<8x1xf32>
    %116 = vector.broadcast %115 : vector<8x1xf32> to vector<8x8xf32>
    %117 = arith.subf %113, %116 : vector<8x8xf32>
    %118 = math.exp %117 : vector<8x8xf32>
    %cst_33 = arith.constant dense<0.000000e+00> : vector<8xf32>
    %119 = vector.multi_reduction <add>, %118, %cst_33 [1] : vector<8x8xf32> to vector<8xf32>
    %120 = vector.shape_cast %119 : vector<8xf32> to vector<8x1xf32>
    %121 = arith.truncf %118 : vector<8x8xf32> to vector<8x8xbf16>
    %cst_34 = arith.constant dense<0.000000e+00> : vector<8x8xf32>
    %122 = tpu.matmul %121, %110, %cst_34 {dimension_numbers = #tpu.dot_dimension_numbers<[1], [0], [0], [1], [0, 0, 1, 1], [], []>} : vector<8x8xbf16>, vector<8x8xbf16>, vector<8x8xf32> -> vector<8x8xf32>
    %123 = tpu.reciprocal %120 {approx = true} : vector<8x1xf32> -> vector<8x1xf32>
    %124 = vector.broadcast %123 : vector<8x1xf32> to vector<8x8xf32>
    %125 = arith.mulf %122, %124 : vector<8x8xf32>
    %126 = arith.truncf %125 : vector<8x8xf32> to vector<8x8xbf16>
    %127 = tpu.concatenate %60, %82, %104, %126 in 1 : vector<8x8xbf16>, vector<8x8xbf16>, vector<8x8xbf16>, vector<8x8xbf16> -> vector<8x32xbf16>
    %c0_35 = arith.constant 0 : index
    %c0_36 = arith.constant 0 : index
    %128 = vector.load %arg6[%c0_35, %c0_36] : memref<32x32xbf16, #tpu.memory_space<vmem>>, vector<32x32xbf16>
    %cst_37 = arith.constant dense<0.000000e+00> : vector<8x32xf32>
    %129 = tpu.matmul %127, %128, %cst_37 {dimension_numbers = #tpu.dot_dimension_numbers<[1], [0], [0], [1], [0, 0, 1, 1], [], []>} : vector<8x32xbf16>, vector<32x32xbf16>, vector<8x32xf32> -> vector<8x32xf32>
    %130 = arith.addf %2, %129 : vector<8x32xf32>
    %c0_38 = arith.constant 0 : index
    %c0_39 = arith.constant 0 : index
    %131 = vector.load %arg7[%c0_38, %c0_39] : memref<1x32xf32, #tpu.memory_space<vmem>>, vector<1x32xf32>
    %132 = vector.broadcast %131 : vector<1x32xf32> to vector<8x32xf32>
    %133 = arith.addf %130, %132 : vector<8x32xf32>
    %c0_40 = arith.constant 0 : index
    %c0_41 = arith.constant 0 : index
    %134 = vector.load %arg8[%c0_40, %c0_41] : memref<1x32xf32, #tpu.memory_space<vmem>>, vector<1x32xf32>
    %135 = vector.broadcast %134 : vector<1x32xf32> to vector<8x32xf32>
    %136 = arith.addf %133, %135 : vector<8x32xf32>
    %c0_42 = arith.constant 0 : index
    %c0_43 = arith.constant 0 : index
    %137 = vector.load %arg9[%c0_42, %c0_43] : memref<1x32xf32, #tpu.memory_space<vmem>>, vector<1x32xf32>
    %c0_44 = arith.constant 0 : index
    %c0_45 = arith.constant 0 : index
    %138 = vector.load %arg10[%c0_44, %c0_45] : memref<1x32xf32, #tpu.memory_space<vmem>>, vector<1x32xf32>
    %cst_46 = arith.constant dense<0.000000e+00> : vector<8xf32>
    %139 = vector.multi_reduction <add>, %136, %cst_46 [1] : vector<8x32xf32> to vector<8xf32>
    %140 = vector.shape_cast %139 : vector<8xf32> to vector<8x1xf32>
    %cst_47 = arith.constant 3.200000e+01 : f32
    %141 = vector.broadcast %cst_47 : f32 to vector<8x1xf32>
    %142 = arith.divf %140, %141 : vector<8x1xf32>
    %143 = vector.broadcast %142 : vector<8x1xf32> to vector<8x32xf32>
    %144 = arith.subf %136, %143 : vector<8x32xf32>
    %145 = arith.mulf %144, %144 : vector<8x32xf32>
    %cst_48 = arith.constant dense<0.000000e+00> : vector<8xf32>
    %146 = vector.multi_reduction <add>, %145, %cst_48 [1] : vector<8x32xf32> to vector<8xf32>
    %147 = vector.shape_cast %146 : vector<8xf32> to vector<8x1xf32>
    %cst_49 = arith.constant 3.200000e+01 : f32
    %148 = vector.broadcast %cst_49 : f32 to vector<8x1xf32>
    %149 = arith.divf %147, %148 : vector<8x1xf32>
    %150 = vector.broadcast %142 : vector<8x1xf32> to vector<8x32xf32>
    %151 = arith.subf %136, %150 : vector<8x32xf32>
    %cst_50 = arith.constant 9.99999974E-6 : f32
    %152 = vector.broadcast %cst_50 : f32 to vector<8x1xf32>
    %153 = arith.addf %149, %152 : vector<8x1xf32>
    %154 = math.rsqrt %153 : vector<8x1xf32>
    %155 = vector.broadcast %154 : vector<8x1xf32> to vector<8x32xf32>
    %156 = arith.mulf %151, %155 : vector<8x32xf32>
    %157 = vector.broadcast %137 : vector<1x32xf32> to vector<8x32xf32>
    %158 = arith.mulf %156, %157 : vector<8x32xf32>
    %159 = vector.broadcast %138 : vector<1x32xf32> to vector<8x32xf32>
    %160 = arith.addf %158, %159 : vector<8x32xf32>
    %161 = arith.truncf %160 : vector<8x32xf32> to vector<8x32xbf16>
    %c0_51 = arith.constant 0 : index
    %c0_52 = arith.constant 0 : index
    %162 = vector.load %arg11[%c0_51, %c0_52] : memref<32x128xbf16, #tpu.memory_space<vmem>>, vector<32x128xbf16>
    %cst_53 = arith.constant dense<0.000000e+00> : vector<8x128xf32>
    %163 = tpu.matmul %161, %162, %cst_53 {dimension_numbers = #tpu.dot_dimension_numbers<[1], [0], [0], [1], [0, 0, 1, 1], [], []>} : vector<8x32xbf16>, vector<32x128xbf16>, vector<8x128xf32> -> vector<8x128xf32>
    %c0_54 = arith.constant 0 : index
    %c0_55 = arith.constant 0 : index
    %164 = vector.load %arg12[%c0_54, %c0_55] : memref<1x128xf32, #tpu.memory_space<vmem>>, vector<1x128xf32>
    %165 = vector.broadcast %164 : vector<1x128xf32> to vector<8x128xf32>
    %166 = arith.addf %163, %165 : vector<8x128xf32>
    %cst_56 = arith.constant 5.000000e-01 : f32
    %167 = vector.broadcast %cst_56 : f32 to vector<8x128xf32>
    %168 = arith.mulf %167, %166 : vector<8x128xf32>
    %cst_57 = arith.constant 4.471500e-02 : f32
    %169 = vector.broadcast %cst_57 : f32 to vector<8x128xf32>
    %170 = arith.mulf %169, %166 : vector<8x128xf32>
    %171 = arith.mulf %170, %166 : vector<8x128xf32>
    %172 = arith.mulf %171, %166 : vector<8x128xf32>
    %173 = arith.addf %166, %172 : vector<8x128xf32>
    %cst_58 = arith.constant 0.797884583 : f32
    %174 = vector.broadcast %cst_58 : f32 to vector<8x128xf32>
    %175 = arith.mulf %174, %173 : vector<8x128xf32>
    %176 = math.tanh %175 : vector<8x128xf32>
    %cst_59 = arith.constant 1.000000e+00 : f32
    %177 = vector.broadcast %cst_59 : f32 to vector<8x128xf32>
    %178 = arith.addf %177, %176 : vector<8x128xf32>
    %179 = arith.mulf %168, %178 : vector<8x128xf32>
    %180 = arith.truncf %179 : vector<8x128xf32> to vector<8x128xbf16>
    %c0_60 = arith.constant 0 : index
    %c0_61 = arith.constant 0 : index
    %181 = vector.load %arg13[%c0_60, %c0_61] : memref<128x32xbf16, #tpu.memory_space<vmem>>, vector<128x32xbf16>
    %cst_62 = arith.constant dense<0.000000e+00> : vector<8x32xf32>
    %182 = tpu.matmul %180, %181, %cst_62 {dimension_numbers = #tpu.dot_dimension_numbers<[1], [0], [0], [1], [0, 0, 1, 1], [], []>} : vector<8x128xbf16>, vector<128x32xbf16>, vector<8x32xf32> -> vector<8x32xf32>
    %c0_63 = arith.constant 0 : index
    %c0_64 = arith.constant 0 : index
    %183 = vector.load %arg14[%c0_63, %c0_64] : memref<1x32xf32, #tpu.memory_space<vmem>>, vector<1x32xf32>
    %184 = vector.broadcast %183 : vector<1x32xf32> to vector<8x32xf32>
    %185 = arith.addf %182, %184 : vector<8x32xf32>
    %186 = arith.addf %136, %185 : vector<8x32xf32>
    %187 = arith.truncf %186 : vector<8x32xf32> to vector<8x32xbf16>
    %c0_65 = arith.constant 0 : index
    %c0_66 = arith.constant 0 : index
    %c0_67 = arith.constant 0 : index
    %188 = vector.load %arg15[%c0_65, %c0_66, %c0_67] : memref<1x8x32xbf16, #tpu.memory_space<vmem>>, vector<1x8x32xbf16>
    %189 = vector.shape_cast %188 : vector<1x8x32xbf16> to vector<8x32xbf16>
    %190 = vector.shape_cast %187 : vector<8x32xbf16> to vector<1x8x32xbf16>
    tpu.vector_store %arg15[%c0_65, %c0_66, %c0_67], %190 {strides = array<i32>} : memref<1x8x32xbf16, #tpu.memory_space<vmem>>, vector<1x8x32xbf16>,
    return
  }
  func.func @transform_0(%arg0: i32) -> (i32, i32, i32) {
    %c0_i32 = arith.constant 0 : i32
    %c0_i32_0 = arith.constant 0 : i32
    %c0_i32_1 = arith.constant 0 : i32
    return %arg0, %c0_i32, %c0_i32_0 : i32, i32, i32
  }
  func.func @transform_1(%arg0: i32) -> (i32, i32) {
    %c0_i32 = arith.constant 0 : i32
    %c0_i32_0 = arith.constant 0 : i32
    %c0_i32_1 = arith.constant 0 : i32
    return %c0_i32, %c0_i32_0 : i32, i32
  }
  func.func @transform_2(%arg0: i32) -> (i32, i32) {
    %c0_i32 = arith.constant 0 : i32
    %c0_i32_0 = arith.constant 0 : i32
    %c0_i32_1 = arith.constant 0 : i32
    return %c0_i32, %c0_i32_0 : i32, i32
  }
  func.func @transform_3(%arg0: i32) -> (i32, i32) {
    %c0_i32 = arith.constant 0 : i32
    %c0_i32_0 = arith.constant 0 : i32
    %c0_i32_1 = arith.constant 0 : i32
    return %c0_i32, %c0_i32_0 : i32, i32
  }
  func.func @transform_4(%arg0: i32) -> (i32, i32) {
    %c0_i32 = arith.constant 0 : i32
    %c0_i32_0 = arith.constant 0 : i32
    %c0_i32_1 = arith.constant 0 : i32
    return %c0_i32, %c0_i32_0 : i32, i32
  }
  func.func @transform_5(%arg0: i32) -> (i32, i32) {
    %c0_i32 = arith.constant 0 : i32
    %c0_i32_0 = arith.constant 0 : i32
    %c0_i32_1 = arith.constant 0 : i32
    return %c0_i32, %c0_i32_0 : i32, i32
  }
  func.func @transform_6(%arg0: i32) -> (i32, i32) {
    %c0_i32 = arith.constant 0 : i32
    %c0_i32_0 = arith.constant 0 : i32
    %c0_i32_1 = arith.constant 0 : i32
    return %c0_i32, %c0_i32_0 : i32, i32
  }
  func.func @transform_7(%arg0: i32) -> (i32, i32) {
    %c0_i32 = arith.constant 0 : i32
    %c0_i32_0 = arith.constant 0 : i32
    %c0_i32_1 = arith.constant 0 : i32
    return %c0_i32, %c0_i32_0 : i32, i32
  }
  func.func @transform_8(%arg0: i32) -> (i32, i32) {
    %c0_i32 = arith.constant 0 : i32
    %c0_i32_0 = arith.constant 0 : i32
    %c0_i32_1 = arith.constant 0 : i32
    return %c0_i32, %c0_i32_0 : i32, i32
  }
  func.func @transform_9(%arg0: i32) -> (i32, i32) {
    %c0_i32 = arith.constant 0 : i32
    %c0_i32_0 = arith.constant 0 : i32
    %c0_i32_1 = arith.constant 0 : i32
    return %c0_i32, %c0_i32_0 : i32, i32
  }
  func.func @transform_10(%arg0: i32) -> (i32, i32) {
    %c0_i32 = arith.constant 0 : i32
    %c0_i32_0 = arith.constant 0 : i32
    %c0_i32_1 = arith.constant 0 : i32
    return %c0_i32, %c0_i32_0 : i32, i32
  }
  func.func @transform_11(%arg0: i32) -> (i32, i32) {
    %c0_i32 = arith.constant 0 : i32
    %c0_i32_0 = arith.constant 0 : i32
    %c0_i32_1 = arith.constant 0 : i32
    return %c0_i32, %c0_i32_0 : i32, i32
  }
  func.func @transform_12(%arg0: i32) -> (i32, i32) {
    %c0_i32 = arith.constant 0 : i32
    %c0_i32_0 = arith.constant 0 : i32
    %c0_i32_1 = arith.constant 0 : i32
    return %c0_i32, %c0_i32_0 : i32, i32
  }
  func.func @transform_13(%arg0: i32) -> (i32, i32) {
    %c0_i32 = arith.constant 0 : i32
    %c0_i32_0 = arith.constant 0 : i32
    %c0_i32_1 = arith.constant 0 : i32
    return %c0_i32, %c0_i32_0 : i32, i32
  }
  func.func @transform_14(%arg0: i32) -> (i32, i32, i32) {
    %c0_i32 = arith.constant 0 : i32
    %c0_i32_0 = arith.constant 0 : i32
    %c0_i32_1 = arith.constant 0 : i32
    return %arg0, %c0_i32, %c0_i32_0 : i32, i32, i32
  }
}

</mosaic_0001>

<llo_original>
// kernel: _forward.5
$region0: #{_forward.5}
  #allocation0 [shape = 'u32[]', space=smem, size = 0x4, offset = 0x4, fixed_abs, tag = 'smem constant byte address 0x4 - core index']
  #allocation1 [shape = 'u32[72,128]{1,0:T(1,128)}', space=vmem, size = 0x9000, scoped, tag = 'internal scratch']
  %s0 = inlined_call_operand.vmem [shape: bf16[16,32], index: 0, kind: input, shape index: {}]
  %s1 = inlined_call_operand.vmem [shape: f32[1,32], index: 1, kind: input, shape index: {}]
  %s2 = inlined_call_operand.vmem [shape: f32[1,32], index: 2, kind: input, shape index: {}]
  %s3 = inlined_call_operand.vmem [shape: bf16[32,128], index: 3, kind: input, shape index: {}]
  %s4 = inlined_call_operand.vmem [shape: f32[1,128], index: 4, kind: input, shape index: {}]
  %s5 = inlined_call_operand.vmem [shape: f32[16,128], index: 5, kind: output, shape index: {}]
  %s6 = sld [smem:[#allocation0]]
  $region30: #{_forward.5} parent=0
    _
  %s8 = ssub.s32 1, %s6
  %s9 = scalar_select 0, %s8, %s6
  // Predicated region
  $region2: #{_forward.5} parent=0 // pred_check
    _
  $region3: #{_forward.5} parent=0 // pred_check_branch
    %11 = sbr.rel (0) target = $region5
  $region4: #{_forward.5} parent=0 // pred_region
    _
  $region5: #{_forward.5} parent=0 // pred_fallthru
    _
  // Predicated region
  $region6: #{_forward.5} parent=0 // pred_check
    _
  $region7: #{_forward.5} parent=0 // pred_check_branch
    %13 = sbr.rel (0) target = $region9
  $region8: #{_forward.5} parent=0 // pred_region
    _
  $region9: #{_forward.5} parent=0 // pred_fallthru
    _
  // Predicated region
  $region10: #{_forward.5} parent=0 // pred_check
    _
  $region11: #{_forward.5} parent=0 // pred_check_branch
    %15 = sbr.rel (0) target = $region13
  $region12: #{_forward.5} parent=0 // pred_region
    _
  $region13: #{_forward.5} parent=0 // pred_fallthru
    _
  // Predicated region
  $region14: #{_forward.5} parent=0 // pred_check
    _
  $region15: #{_forward.5} parent=0 // pred_check_branch
    %17 = sbr.rel (0) target = $region17
  $region16: #{_forward.5} parent=0 // pred_region
    _
  $region17: #{_forward.5} parent=0 // pred_fallthru
    _
  // Predicated region
  $region18: #{_forward.5} parent=0 // pred_check
    _
  $region19: #{_forward.5} parent=0 // pred_check_branch
    %19 = sbr.rel (0) target = $region21
  $region20: #{_forward.5} parent=0 // pred_region
    _
  $region21: #{_forward.5} parent=0 // pred_fallthru
    _
  %v21 = vld [vmem:[%s0] sm:$0xf]
  %v22 = vld [vmem:[%s0 + $0x4] sm:$0xf]
  %v23 = vunpack.c.l.bf16 %v21
  %v24 = vunpack.c.l.bf16 %v22
  %v25 = vld [vmem:[%s1] sm:$0x1]
  %v26 = vld [vmem:[%s2] sm:$0x1]
  %vm27 = vcmask 261120
  %v28 = vsel %vm27, %v23, 0.0
  %29 = vadd.xlane.f32.xlu0 %v28
  %v30 = vpop.xlane.xlu0 %29
  %v31 = vsel %vm27, %v24, 0.0
  %32 = vadd.xlane.f32.xlu0 %v31
  %v33 = vpop.xlane.xlu0 %32
  %v34 = vrcp.pop 32.0
  %v35 = vmul.f32 32.0, %v34
  %v36 = vsub.f32 1.0, %v35
  %v37 = vmul.f32 %v34, %v36
  %v38 = vadd.f32 %v34, %v37
  %vm39 = vweird.f32 %v34
  %v40 = vsel %vm39, %v34, %v38
  %v41 = vmul.f32 %v30, %v40
  %v42 = vmul.f32 %v33, %v40
  %v43 = vsub.f32 %v23, %v41
  %v44 = vsub.f32 %v24, %v42
  %v45 = vmul.f32 %v43, %v43
  %v46 = vmul.f32 %v44, %v44
  %v47 = vsel %vm27, %v45, 0.0
  %48 = vadd.xlane.f32.xlu0 %v47
  %v49 = vpop.xlane.xlu0 %48
  %v50 = vsel %vm27, %v46, 0.0
  %51 = vadd.xlane.f32.xlu0 %v50
  %v52 = vpop.xlane.xlu0 %51
  %v53 = vmul.f32 %v49, %v40
  %v54 = vmul.f32 %v52, %v40
  %v55 = vadd.f32 %v53, 1e-05
  %v56 = vadd.f32 %v54, 1e-05
  %v57 = vrsqrt.pop %v55
  %v58 = vmul.f32 %v57, %v55
  %v59 = vmul.f32 %v58, %v57
  %v60 = vmul.f32 0.5, %v59
  %v61 = vsub.f32 1.5, %v60
  %v62 = vmul.f32 %v57, %v61
  %vm63 = vweird.f32 %v55
  %vm64 = vweird.f32 %v57
  %vm65 = vmor %vm63, %vm64
  %v66 = vsel %vm65, %v57, %v62
  %v67 = vrsqrt.pop %v56
  %v68 = vmul.f32 %v67, %v56
  %v69 = vmul.f32 %v68, %v67
  %v70 = vmul.f32 0.5, %v69
  %v71 = vsub.f32 1.5, %v70
  %v72 = vmul.f32 %v67, %v71
  %vm73 = vweird.f32 %v56
  %vm74 = vweird.f32 %v67
  %vm75 = vmor %vm73, %vm74
  %v76 = vsel %vm75, %v67, %v72
  %v77 = vmul.f32 %v43, %v66
  %v78 = vmul.f32 %v44, %v76
  %v80 = vperm.slane %v25, 0
  %v82 = vmul.f32 %v77, %v80
  %v83 = vmul.f32 %v78, %v80
  %v85 = vperm.slane %v26, 0
  %v87 = vadd.f32 %v82, %v85
  %v88 = vadd.f32 %v83, %v85
  %v89 = vpack.c.bf16 %v88, %v87
  %v90 = vld [vmem:[%s3] sm:$0xf]
  %v91 = vld [vmem:[%s3 + $0x4] sm:$0xf]
  %v92 = vld [vmem:[%s3 + $0x8] sm:$0xf]
  %v93 = vld [vmem:[%s3 + $0xc] sm:$0xf]
  %v94 = vld [vmem:[%s4] sm:$0x1]
  %v96 = vperm.slane %v94, 0
  %v102 = vunpack.c.l.b16 %v90
  %v103 = vunpack.c.l.b16 %v91
  %v104 = vunpack.c.l.b16 %v92
  %v105 = vunpack.c.l.b16 %v93
  %v106 = vpack.c.b16 %v103, %v102
  %v107 = vpack.c.b16 %v105, %v104
  %v111 = vsel %vm27, %v89, 0
  %113 = vmatpush.bf16.msra.mxu0 0
  %114 = vmatpush.bf16.msra.mxu0 0
  %115 = vmatpush.bf16.msra.mxu0 0
  %116 = vmatpush.bf16.msra.mxu0 0
  %117 = vmatpush.bf16.msra.mxu0 0
  %118 = vmatpush.bf16.msra.mxu0 0
  %119 = vmatpush.bf16.msra.mxu0 %v107
  %120 = vmatpush.bf16.msra.mxu0 %v106
  %121 = vmatmul.bf16.gmra.mxu0 %v111
  %v122 = vpop.f32.mrf.mxu0
  %v123 = vadd.f32 %v96, %v122
  %v124 = vpop.f32.mrf.mxu0
  %v125 = vadd.f32 %v96, %v124
  %126 = vdwg.mxu0
  %127 = vst [vmem:[%s5] sm:$0xff] %v123
  %128 = vst [vmem:[%s5 + $0x8] sm:$0xff] %v125
  // Predicated region
  $region22: #{_forward.5} parent=0 // pred_check
    _
  $region23: #{_forward.5} parent=0 // pred_check_branch
    %130 = sbr.rel (0) target = $region25
  $region24: #{_forward.5} parent=0 // pred_region
    _
  $region25: #{_forward.5} parent=0 // pred_fallthru
    _
  // Predicated region
  $region26: #{_forward.5} parent=0 // pred_check
    _
  $region27: #{_forward.5} parent=0 // pred_check_branch
    %132 = sbr.rel (0) target = $region29
  $region28: #{_forward.5} parent=0 // pred_region
    _
  $region29: #{_forward.5} parent=0 // pred_fallthru
    _

// kernel: _forward.3
$region0: #{_forward.3}
  #allocation0 [shape = 'u32[]', space=smem, size = 0x4, offset = 0x4, fixed_abs, tag = 'smem constant byte address 0x4 - core index']
  #allocation1 [shape = 'u32[72,128]{1,0:T(1,128)}', space=vmem, size = 0x9000, scoped, tag = 'internal scratch']
  %s0 = inlined_call_operand.vmem [shape: bf16[2,8,32], index: 0, kind: input, shape index: {}]
  %s1 = inlined_call_operand.vmem [shape: f32[1,32], index: 1, kind: input, shape index: {}]
  %s2 = inlined_call_operand.vmem [shape: f32[1,32], index: 2, kind: input, shape index: {}]
  %s3 = inlined_call_operand.vmem [shape: bf16[32,96], index: 3, kind: input, shape index: {}]
  %s4 = inlined_call_operand.vmem [shape: f32[1,96], index: 4, kind: input, shape index: {}]
  %s5 = inlined_call_operand.vmem [shape: bf16[32,32], index: 5, kind: input, shape index: {}]
  %s6 = inlined_call_operand.vmem [shape: f32[1,32], index: 6, kind: input, shape index: {}]
  %s7 = inlined_call_operand.vmem [shape: f32[1,32], index: 7, kind: input, shape index: {}]
  %s8 = inlined_call_operand.vmem [shape: f32[1,32], index: 8, kind: input, shape index: {}]
  %s9 = inlined_call_operand.vmem [shape: f32[1,32], index: 9, kind: input, shape index: {}]
  %s10 = inlined_call_operand.vmem [shape: bf16[32,128], index: 10, kind: input, shape index: {}]
  %s11 = inlined_call_operand.vmem [shape: f32[1,128], index: 11, kind: input, shape index: {}]
  %s12 = inlined_call_operand.vmem [shape: bf16[128,32], index: 12, kind: input, shape index: {}]
  %s13 = inlined_call_operand.vmem [shape: f32[1,32], index: 13, kind: input, shape index: {}]
  %s14 = inlined_call_operand.vmem [shape: bf16[2,8,32], index: 14, kind: output, shape index: {}]
  %s15 = sld [smem:[#allocation0]]
  $region89: #{_forward.3} parent=0
    _
  %s17 = ssub.s32 1, %s15
  %s18 = scalar_select 0, %s17, %s15
  loop: start=0, step=1, limit=4
  $region2: #{_forward.3} parent=0 // loop_pre_header
    _
  $region3: #{_forward.3} parent=0 // loop_header
    %s20 = sphi 0, %s24
    %p21 = scmp.ge.s32.totalorder %s20, 4
    %s30 = sphi 0, %s32
    %s33 = sphi 0, %s30
    %s34 = sphi 0, %s33
    %s50 = sphi 0, %s34
    %s54 = sphi 0, %s54
    %s56 = sphi 0, %s54
    %s57 = sphi 0, %s56
    %s71 = sphi 0, %s57
    %s75 = sphi 0, %s75
    %s77 = sphi 0, %s75
    %s78 = sphi 0, %s77
    %s92 = sphi 0, %s78
    %s96 = sphi 0, %s96
    %s98 = sphi 0, %s96
    %s99 = sphi 0, %s98
    %s113 = sphi 0, %s99
    %s117 = sphi 0, %s117
    %s119 = sphi 0, %s117
    %s120 = sphi 0, %s119
    %s134 = sphi 0, %s120
    %s138 = sphi 0, %s138
    %s140 = sphi 0, %s138
    %s141 = sphi 0, %s140
    %s155 = sphi 0, %s141
    %s159 = sphi 0, %s159
    %s161 = sphi 0, %s159
    %s162 = sphi 0, %s161
    %s176 = sphi 0, %s162
    %s180 = sphi 0, %s180
    %s182 = sphi 0, %s180
    %s183 = sphi 0, %s182
    %s197 = sphi 0, %s183
    %s201 = sphi 0, %s201
    %s203 = sphi 0, %s201
    %s204 = sphi 0, %s203
    %s218 = sphi 0, %s204
    %s222 = sphi 0, %s222
    %s224 = sphi 0, %s222
    %s225 = sphi 0, %s224
    %s239 = sphi 0, %s225
    %s243 = sphi 0, %s243
    %s245 = sphi 0, %s243
    %s246 = sphi 0, %s245
    %s260 = sphi 0, %s246
    %s264 = sphi 0, %s264
    %s266 = sphi 0, %s264
    %s267 = sphi 0, %s266
    %s281 = sphi 0, %s267
    %s285 = sphi 0, %s285
    %s287 = sphi 0, %s285
    %s288 = sphi 0, %s287
    %s302 = sphi 0, %s288
    %s306 = sphi 0, %s306
    %s308 = sphi 0, %s306
    %s309 = sphi 0, %s308
    %s323 = sphi 0, %s309
    %s329 = sphi 0, %s331
    %s332 = sphi 0, %s329
    %s333 = sphi 0, %s332
    %s349 = sphi 0, %s333
  $region4: #{_forward.3} parent=0 // loop_header_branch
    %23 = sbr.rel (%p21) target = $region8
  $region5: #{_forward.3} parent=0 // loop_body
    %s25 = ssub.s32 %s20, 1
    %s26 = ssub.s32 %s20, 2
    %s27 = sadd.s32 %s20, 1
    %s28 = ssub.s32 %s20, %s27
    %p29 = scmp.eq.s32.totalorder %s28, 0
    %s31 = sadd.s32 %s30, 1
    %s32 = scalar_select %p29, %s30, %s31
    %p35 = pneg %p29
    %p36 = scmp.eq.s32.totalorder %s20, 1
    %p37 = por %p35, %p36
    %p38 = scmp.ne.s32.totalorder %s30, %s33
    %p39 = scmp.eq.s32.totalorder %s20, 0
    %p40 = por %p38, %p39
    %p41 = scmp.ne.s32.totalorder %s30, %s33
    %p42 = scmp.eq.s32.totalorder %s25, 1
    %p43 = por %p41, %p42
    %p44 = scmp.ne.s32.totalorder %s33, %s34
    %p45 = scmp.eq.s32.totalorder %s25, 0
    %p46 = por %p44, %p45
    %p47 = scmp.ne.s32.totalorder %s33, %s34
    %p48 = scmp.eq.s32.totalorder %s26, 1
    %p49 = por %p47, %p48
    %p51 = scmp.ne.s32.totalorder %s34, %s50
    %p52 = scmp.eq.s32.totalorder %s26, 0
    %p53 = por %p51, %p52
    %s55 = sadd.s32 %s54, 1
    %p58 = scmp.eq.s32.totalorder %s20, 1
    %p59 = scmp.ne.s32.totalorder %s54, %s56
    %p60 = scmp.eq.s32.totalorder %s20, 0
    %p61 = por %p59, %p60
    %p62 = scmp.ne.s32.totalorder %s54, %s56
    %p63 = scmp.eq.s32.totalorder %s25, 1
    %p64 = por %p62, %p63
    %p65 = scmp.ne.s32.totalorder %s56, %s57
    %p66 = scmp.eq.s32.totalorder %s25, 0
    %p67 = por %p65, %p66
    %p68 = scmp.ne.s32.totalorder %s56, %s57
    %p69 = scmp.eq.s32.totalorder %s26, 1
    %p70 = por %p68, %p69
    %p72 = scmp.ne.s32.totalorder %s57, %s71
    %p73 = scmp.eq.s32.totalorder %s26, 0
    %p74 = por %p72, %p73
    %s76 = sadd.s32 %s75, 1
    %p79 = scmp.eq.s32.totalorder %s20, 1
    %p80 = scmp.ne.s32.totalorder %s75, %s77
    %p81 = scmp.eq.s32.totalorder %s20, 0
    %p82 = por %p80, %p81
    %p83 = scmp.ne.s32.totalorder %s75, %s77
    %p84 = scmp.eq.s32.totalorder %s25, 1
    %p85 = por %p83, %p84
    %p86 = scmp.ne.s32.totalorder %s77, %s78
    %p87 = scmp.eq.s32.totalorder %s25, 0
    %p88 = por %p86, %p87
    %p89 = scmp.ne.s32.totalorder %s77, %s78
    %p90 = scmp.eq.s32.totalorder %s26, 1
    %p91 = por %p89, %p90
    %p93 = scmp.ne.s32.totalorder %s78, %s92
    %p94 = scmp.eq.s32.totalorder %s26, 0
    %p95 = por %p93, %p94
    %s97 = sadd.s32 %s96, 1
    %p100 = scmp.eq.s32.totalorder %s20, 1
    %p101 = scmp.ne.s32.totalorder %s96, %s98
    %p102 = scmp.eq.s32.totalorder %s20, 0
    %p103 = por %p101, %p102
    %p104 = scmp.ne.s32.totalorder %s96, %s98
    %p105 = scmp.eq.s32.totalorder %s25, 1
    %p106 = por %p104, %p105
    %p107 = scmp.ne.s32.totalorder %s98, %s99
    %p108 = scmp.eq.s32.totalorder %s25, 0
    %p109 = por %p107, %p108
    %p110 = scmp.ne.s32.totalorder %s98, %s99
    %p111 = scmp.eq.s32.totalorder %s26, 1
    %p112 = por %p110, %p111
    %p114 = scmp.ne.s32.totalorder %s99, %s113
    %p115 = scmp.eq.s32.totalorder %s26, 0
    %p116 = por %p114, %p115
    %s118 = sadd.s32 %s117, 1
    %p121 = scmp.eq.s32.totalorder %s20, 1
    %p122 = scmp.ne.s32.totalorder %s117, %s119
    %p123 = scmp.eq.s32.totalorder %s20, 0
    %p124 = por %p122, %p123
    %p125 = scmp.ne.s32.totalorder %s117, %s119
    %p126 = scmp.eq.s32.totalorder %s25, 1
    %p127 = por %p125, %p126
    %p128 = scmp.ne.s32.totalorder %s119, %s120
    %p129 = scmp.eq.s32.totalorder %s25, 0
    %p130 = por %p128, %p129
    %p131 = scmp.ne.s32.totalorder %s119, %s120
    %p132 = scmp.eq.s32.totalorder %s26, 1
    %p133 = por %p131, %p132
    %p135 = scmp.ne.s32.totalorder %s120, %s134
    %p136 = scmp.eq.s32.totalorder %s26, 0
    %p137 = por %p135, %p136
    %s139 = sadd.s32 %s138, 1
    %p142 = scmp.eq.s32.totalorder %s20, 1
    %p143 = scmp.ne.s32.totalorder %s138, %s140
    %p144 = scmp.eq.s32.totalorder %s20, 0
    %p145 = por %p143, %p144
    %p146 = scmp.ne.s32.totalorder %s138, %s140
    %p147 = scmp.eq.s32.totalorder %s25, 1
    %p148 = por %p146, %p147
    %p149 = scmp.ne.s32.totalorder %s140, %s141
    %p150 = scmp.eq.s32.totalorder %s25, 0
    %p151 = por %p149, %p150
    %p152 = scmp.ne.s32.totalorder %s140, %s141
    %p153 = scmp.eq.s32.totalorder %s26, 1
    %p154 = por %p152, %p153
    %p156 = scmp.ne.s32.totalorder %s141, %s155
    %p157 = scmp.eq.s32.totalorder %s26, 0
    %p158 = por %p156, %p157
    %s160 = sadd.s32 %s159, 1
    %p163 = scmp.eq.s32.totalorder %s20, 1
    %p164 = scmp.ne.s32.totalorder %s159, %s161
    %p165 = scmp.eq.s32.totalorder %s20, 0
    %p166 = por %p164, %p165
    %p167 = scmp.ne.s32.totalorder %s159, %s161
    %p168 = scmp.eq.s32.totalorder %s25, 1
    %p169 = por %p167, %p168
    %p170 = scmp.ne.s32.totalorder %s161, %s162
    %p171 = scmp.eq.s32.totalorder %s25, 0
    %p172 = por %p170, %p171
    %p173 = scmp.ne.s32.totalorder %s161, %s162
    %p174 = scmp.eq.s32.totalorder %s26, 1
    %p175 = por %p173, %p174
    %p177 = scmp.ne.s32.totalorder %s162, %s176
    %p178 = scmp.eq.s32.totalorder %s26, 0
    %p179 = por %p177, %p178
    %s181 = sadd.s32 %s180, 1
    %p184 = scmp.eq.s32.totalorder %s20, 1
    %p185 = scmp.ne.s32.totalorder %s180, %s182
    %p186 = scmp.eq.s32.totalorder %s20, 0
    %p187 = por %p185, %p186
    %p188 = scmp.ne.s32.totalorder %s180, %s182
    %p189 = scmp.eq.s32.totalorder %s25, 1
    %p190 = por %p188, %p189
    %p191 = scmp.ne.s32.totalorder %s182, %s183
    %p192 = scmp.eq.s32.totalorder %s25, 0
    %p193 = por %p191, %p192
    %p194 = scmp.ne.s32.totalorder %s182, %s183
    %p195 = scmp.eq.s32.totalorder %s26, 1
    %p196 = por %p194, %p195
    %p198 = scmp.ne.s32.totalorder %s183, %s197
    %p199 = scmp.eq.s32.totalorder %s26, 0
    %p200 = por %p198, %p199
    %s202 = sadd.s32 %s201, 1
    %p205 = scmp.eq.s32.totalorder %s20, 1
    %p206 = scmp.ne.s32.totalorder %s201, %s203
    %p207 = scmp.eq.s32.totalorder %s20, 0
    %p208 = por %p206, %p207
    %p209 = scmp.ne.s32.totalorder %s201, %s203
    %p210 = scmp.eq.s32.totalorder %s25, 1
    %p211 = por %p209, %p210
    %p212 = scmp.ne.s32.totalorder %s203, %s204
    %p213 = scmp.eq.s32.totalorder %s25, 0
    %p214 = por %p212, %p213
    %p215 = scmp.ne.s32.totalorder %s203, %s204
    %p216 = scmp.eq.s32.totalorder %s26, 1
    %p217 = por %p215, %p216
    %p219 = scmp.ne.s32.totalorder %s204, %s218
    %p220 = scmp.eq.s32.totalorder %s26, 0
    %p221 = por %p219, %p220
    %s223 = sadd.s32 %s222, 1
    %p226 = scmp.eq.s32.totalorder %s20, 1
    %p227 = scmp.ne.s32.totalorder %s222, %s224
    %p228 = scmp.eq.s32.totalorder %s20, 0
    %p229 = por %p227, %p228
    %p230 = scmp.ne.s32.totalorder %s222, %s224
    %p231 = scmp.eq.s32.totalorder %s25, 1
    %p232 = por %p230, %p231
    %p233 = scmp.ne.s32.totalorder %s224, %s225
    %p234 = scmp.eq.s32.totalorder %s25, 0
    %p235 = por %p233, %p234
    %p236 = scmp.ne.s32.totalorder %s224, %s225
    %p237 = scmp.eq.s32.totalorder %s26, 1
    %p238 = por %p236, %p237
    %p240 = scmp.ne.s32.totalorder %s225, %s239
    %p241 = scmp.eq.s32.totalorder %s26, 0
    %p242 = por %p240, %p241
    %s244 = sadd.s32 %s243, 1
    %p247 = scmp.eq.s32.totalorder %s20, 1
    %p248 = scmp.ne.s32.totalorder %s243, %s245
    %p249 = scmp.eq.s32.totalorder %s20, 0
    %p250 = por %p248, %p249
    %p251 = scmp.ne.s32.totalorder %s243, %s245
    %p252 = scmp.eq.s32.totalorder %s25, 1
    %p253 = por %p251, %p252
    %p254 = scmp.ne.s32.totalorder %s245, %s246
    %p255 = scmp.eq.s32.totalorder %s25, 0
    %p256 = por %p254, %p255
    %p257 = scmp.ne.s32.totalorder %s245, %s246
    %p258 = scmp.eq.s32.totalorder %s26, 1
    %p259 = por %p257, %p258
    %p261 = scmp.ne.s32.totalorder %s246, %s260
    %p262 = scmp.eq.s32.totalorder %s26, 0
    %p263 = por %p261, %p262
    %s265 = sadd.s32 %s264, 1
    %p268 = scmp.eq.s32.totalorder %s20, 1
    %p269 = scmp.ne.s32.totalorder %s264, %s266
    %p270 = scmp.eq.s32.totalorder %s20, 0
    %p271 = por %p269, %p270
    %p272 = scmp.ne.s32.totalorder %s264, %s266
    %p273 = scmp.eq.s32.totalorder %s25, 1
    %p274 = por %p272, %p273
    %p275 = scmp.ne.s32.totalorder %s266, %s267
    %p276 = scmp.eq.s32.totalorder %s25, 0
    %p277 = por %p275, %p276
    %p278 = scmp.ne.s32.totalorder %s266, %s267
    %p279 = scmp.eq.s32.totalorder %s26, 1
    %p280 = por %p278, %p279
    %p282 = scmp.ne.s32.totalorder %s267, %s281
    %p283 = scmp.eq.s32.totalorder %s26, 0
    %p284 = por %p282, %p283
    %s286 = sadd.s32 %s285, 1
    %p289 = scmp.eq.s32.totalorder %s20, 1
    %p290 = scmp.ne.s32.totalorder %s285, %s287
    %p291 = scmp.eq.s32.totalorder %s20, 0
    %p292 = por %p290, %p291
    %p293 = scmp.ne.s32.totalorder %s285, %s287
    %p294 = scmp.eq.s32.totalorder %s25, 1
    %p295 = por %p293, %p294
    %p296 = scmp.ne.s32.totalorder %s287, %s288
    %p297 = scmp.eq.s32.totalorder %s25, 0
    %p298 = por %p296, %p297
    %p299 = scmp.ne.s32.totalorder %s287, %s288
    %p300 = scmp.eq.s32.totalorder %s26, 1
    %p301 = por %p299, %p300
    %p303 = scmp.ne.s32.totalorder %s288, %s302
    %p304 = scmp.eq.s32.totalorder %s26, 0
    %p305 = por %p303, %p304
    %s307 = sadd.s32 %s306, 1
    %p310 = scmp.eq.s32.totalorder %s20, 1
    %p311 = scmp.ne.s32.totalorder %s306, %s308
    %p312 = scmp.eq.s32.totalorder %s20, 0
    %p313 = por %p311, %p312
    %p314 = scmp.ne.s32.totalorder %s306, %s308
    %p315 = scmp.eq.s32.totalorder %s25, 1
    %p316 = por %p314, %p315
    %p317 = scmp.ne.s32.totalorder %s308, %s309
    %p318 = scmp.eq.s32.totalorder %s25, 0
    %p319 = por %p317, %p318
    %p320 = scmp.ne.s32.totalorder %s308, %s309
    %p321 = scmp.eq.s32.totalorder %s26, 1
    %p322 = por %p320, %p321
    %p324 = scmp.ne.s32.totalorder %s309, %s323
    %p325 = scmp.eq.s32.totalorder %s26, 0
    %p326 = por %p324, %p325
    %s327 = ssub.s32 %s20, %s27
    %p328 = scmp.eq.s32.totalorder %s327, 0
    %s330 = sadd.s32 %s329, 1
    %s331 = scalar_select %p328, %s329, %s330
    %p334 = pneg %p328
    %p335 = scmp.eq.s32.totalorder %s20, 1
    %p336 = por %p334, %p335
    %p337 = scmp.ne.s32.totalorder %s329, %s332
    %p338 = scmp.eq.s32.totalorder %s20, 0
    %p339 = por %p337, %p338
    %p340 = scmp.ne.s32.totalorder %s329, %s332
    %p341 = scmp.eq.s32.totalorder %s25, 1
    %p342 = por %p340, %p341
    %p343 = scmp.ne.s32.totalorder %s332, %s333
    %p344 = scmp.eq.s32.totalorder %s25, 0
    %p345 = por %p343, %p344
    %p346 = scmp.ne.s32.totalorder %s332, %s333
    %p347 = scmp.eq.s32.totalorder %s26, 1
    %p348 = por %p346, %p347
    %p350 = scmp.ne.s32.totalorder %s333, %s349
    %p351 = scmp.eq.s32.totalorder %s26, 0
    %p352 = por %p350, %p351
    %p353 = scmp.le.s32.totalorder 1, %s20
    %p354 = scmp.lt.s32.totalorder %s20, 3
    %p355 = pnand %p353, %p354
    %p356 = pneg %p355
    // Predicated region
    $region9: #{_forward.3} parent=5 // pred_check
      _
    $region10: #{_forward.3} parent=5 // pred_check_branch
      %358 = sbr.rel (%p355) target = $region12
    $region11: #{_forward.3} parent=5 // pred_region
      %s359 = ssub.s32 %s20, 1
      // Predicated region
      $region13: #{_forward.3} parent=11 // pred_check
        %p360 = pneg %p67
      $region14: #{_forward.3} parent=11 // pred_check_branch
        %362 = sbr.rel (%p360) target = $region16
      $region15: #{_forward.3} parent=11 // pred_region
        _
      $region16: #{_forward.3} parent=11 // pred_fallthru
        _
      // Predicated region
      $region17: #{_forward.3} parent=11 // pred_check
        %p363 = pneg %p88
      $region18: #{_forward.3} parent=11 // pred_check_branch
        %365 = sbr.rel (%p363) target = $region20
      $region19: #{_forward.3} parent=11 // pred_region
        _
      $region20: #{_forward.3} parent=11 // pred_fallthru
        _
      // Predicated region
      $region21: #{_forward.3} parent=11 // pred_check
        %p366 = pneg %p109
      $region22: #{_forward.3} parent=11 // pred_check_branch
        %368 = sbr.rel (%p366) target = $region24
      $region23: #{_forward.3} parent=11 // pred_region
        _
      $region24: #{_forward.3} parent=11 // pred_fallthru
        _
      // Predicated region
      $region25: #{_forward.3} parent=11 // pred_check
        %p369 = pneg %p130
      $region26: #{_forward.3} parent=11 // pred_check_branch
        %371 = sbr.rel (%p369) target = $region28
      $region27: #{_forward.3} parent=11 // pred_region
        _
      $region28: #{_forward.3} parent=11 // pred_fallthru
        _
      // Predicated region
      $region29: #{_forward.3} parent=11 // pred_check
        %p372 = pneg %p151
      $region30: #{_forward.3} parent=11 // pred_check_branch
        %374 = sbr.rel (%p372) target = $region32
      $region31: #{_forward.3} parent=11 // pred_region
        _
      $region32: #{_forward.3} parent=11 // pred_fallthru
        _
      // Predicated region
      $region33: #{_forward.3} parent=11 // pred_check
        %p375 = pneg %p172
      $region34: #{_forward.3} parent=11 // pred_check_branch
        %377 = sbr.rel (%p375) target = $region36
      $region35: #{_forward.3} parent=11 // pred_region
        _
      $region36: #{_forward.3} parent=11 // pred_fallthru
        _
      // Predicated region
      $region37: #{_forward.3} parent=11 // pred_check
        %p378 = pneg %p193
      $region38: #{_forward.3} parent=11 // pred_check_branch
        %380 = sbr.rel (%p378) target = $region40
      $region39: #{_forward.3} parent=11 // pred_region
        _
      $region40: #{_forward.3} parent=11 // pred_fallthru
        _
      // Predicated region
      $region41: #{_forward.3} parent=11 // pred_check
        %p381 = pneg %p214
      $region42: #{_forward.3} parent=11 // pred_check_branch
        %383 = sbr.rel (%p381) target = $region44
      $region43: #{_forward.3} parent=11 // pred_region
        _
      $region44: #{_forward.3} parent=11 // pred_fallthru
        _
      // Predicated region
      $region45: #{_forward.3} parent=11 // pred_check
        %p384 = pneg %p235
      $region46: #{_forward.3} parent=11 // pred_check_branch
        %386 = sbr.rel (%p384) target = $region48
      $region47: #{_forward.3} parent=11 // pred_region
        _
      $region48: #{_forward.3} parent=11 // pred_fallthru
        _
      // Predicated region
      $region49: #{_forward.3} parent=11 // pred_check
        %p387 = pneg %p256
      $region50: #{_forward.3} parent=11 // pred_check_branch
        %389 = sbr.rel (%p387) target = $region52
      $region51: #{_forward.3} parent=11 // pred_region
        _
      $region52: #{_forward.3} parent=11 // pred_fallthru
        _
      // Predicated region
      $region53: #{_forward.3} parent=11 // pred_check
        %p390 = pneg %p277
      $region54: #{_forward.3} parent=11 // pred_check_branch
        %392 = sbr.rel (%p390) target = $region56
      $region55: #{_forward.3} parent=11 // pred_region
        _
      $region56: #{_forward.3} parent=11 // pred_fallthru
        _
      // Predicated region
      $region57: #{_forward.3} parent=11 // pred_check
        %p393 = pneg %p298
      $region58: #{_forward.3} parent=11 // pred_check_branch
        %395 = sbr.rel (%p393) target = $region60
      $region59: #{_forward.3} parent=11 // pred_region
        _
      $region60: #{_forward.3} parent=11 // pred_fallthru
        _
      // Predicated region
      $region61: #{_forward.3} parent=11 // pred_check
        %p396 = pneg %p319
      $region62: #{_forward.3} parent=11 // pred_check_branch
        %398 = sbr.rel (%p396) target = $region64
      $region63: #{_forward.3} parent=11 // pred_region
        _
      $region64: #{_forward.3} parent=11 // pred_fallthru
        _
    $region12: #{_forward.3} parent=5 // pred_fallthru
      _
    %p399 = scmp.lt.s32.totalorder %s20, 2
    // Predicated region
    $region65: #{_forward.3} parent=5 // pred_check
      %p400 = pneg %p399
    $region66: #{_forward.3} parent=5 // pred_check_branch
      %402 = sbr.rel (%p400) target = $region68
    $region67: #{_forward.3} parent=5 // pred_region
      // Predicated region
      $region69: #{_forward.3} parent=67 // pred_check
        %p403 = pneg %p40
      $region70: #{_forward.3} parent=67 // pred_check_branch
        %405 = sbr.rel (%p403) target = $region72
      $region71: #{_forward.3} parent=67 // pred_region
        %p406 = scmp.lt.s32.totalorder %s20, 1
        %s407 = scalar_select %p406, %s20, 1
        %s408 = smul.addr %s407, 4
        %s409 = scalar_lea.vmem %s0, %s408
      $region72: #{_forward.3} parent=67 // pred_fallthru
        _
    $region68: #{_forward.3} parent=5 // pred_fallthru
      _
    %p410 = scmp.le.s32.totalorder 1, %s20
    %p411 = scmp.lt.s32.totalorder %s20, 3
    %p412 = pnand %p410, %p411
    %p413 = pneg %p412
    // Predicated region
    $region73: #{_forward.3} parent=5 // pred_check
      _
    $region74: #{_forward.3} parent=5 // pred_check_branch
      %415 = sbr.rel (%p412) target = $region76
    $region75: #{_forward.3} parent=5 // pred_region
      %s416 = ssub.s32 %s20, 1
      %p417 = scmp.lt.s32.totalorder %s25, 1
      %s418 = scalar_select %p417, %s25, 1
      %s419 = smul.addr %s418, 4
      %s420 = scalar_lea.vmem %s0, %s419
      %p421 = pneg %p46
      %p422 = pneg %p43
      %p423 = pneg %p67
      %p424 = pneg %p64
      %p425 = pneg %p88
      %p426 = pneg %p85
      %p427 = pneg %p109
      %p428 = pneg %p106
      %p429 = pneg %p130
      %p430 = pneg %p127
      %p431 = pneg %p151
      %p432 = pneg %p148
      %p433 = pneg %p172
      %p434 = pneg %p169
      %p435 = pneg %p193
      %p436 = pneg %p190
      %p437 = pneg %p214
      %p438 = pneg %p211
      %p439 = pneg %p235
      %p440 = pneg %p232
      %p441 = pneg %p256
      %p442 = pneg %p253
      %p443 = pneg %p277
      %p444 = pneg %p274
      %p445 = pneg %p298
      %p446 = pneg %p295
      %p447 = pneg %p319
      %p448 = pneg %p316
      %p449 = pneg %p345
      %p450 = pneg %p342
      %p451 = scmp.lt.s32.totalorder %s25, 1
      %s452 = scalar_select %p451, %s25, 1
      %s453 = smul.addr %s452, 4
      %s454 = scalar_lea.vmem %s14, %s453
      %p455 = scmp.lt.s32.totalorder %s25, 1
      %s456 = scalar_select %p455, %s25, 1
      %s457 = smul.addr %s456, 4
      %s458 = scalar_lea.vmem %s0, %s457
      %p459 = scmp.lt.s32.totalorder %s25, 1
      %s460 = scalar_select %p459, %s25, 1
      %s461 = smul.addr %s460, 4
      %s462 = scalar_lea.vmem %s14, %s461
      %v464 = vld [vmem:[%s458] sm:$0xf]
      %v465 = vunpack.c.l.bf16 %v464
      %v466 = vld [vmem:[%s1] sm:$0x1]
      %v467 = vld [vmem:[%s2] sm:$0x1]
      %vm468 = vcmask 261120
      %v469 = vsel %vm468, %v465, 0.0
      %470 = vadd.xlane.f32.xlu0 %v469
      %v471 = vpop.xlane.xlu0 %470
      %v472 = vrcp.pop 32.0
      %v473 = vmul.f32 32.0, %v472
      %v474 = vsub.f32 1.0, %v473
      %v475 = vmul.f32 %v472, %v474
      %v476 = vadd.f32 %v472, %v475
      %vm477 = vweird.f32 %v472
      %v478 = vsel %vm477, %v472, %v476
      %v479 = vmul.f32 %v471, %v478
      %v480 = vsub.f32 %v465, %v479
      %v481 = vmul.f32 %v480, %v480
      %v482 = vsel %vm468, %v481, 0.0
      %483 = vadd.xlane.f32.xlu0 %v482
      %v484 = vpop.xlane.xlu0 %483
      %v485 = vmul.f32 %v484, %v478
      %v486 = vadd.f32 %v485, 1e-05
      %v487 = vrsqrt.pop %v486
      %v488 = vmul.f32 %v487, %v486
      %v489 = vmul.f32 %v488, %v487
      %v490 = vmul.f32 0.5, %v489
      %v491 = vsub.f32 1.5, %v490
      %v492 = vmul.f32 %v487, %v491
      %vm493 = vweird.f32 %v486
      %vm494 = vweird.f32 %v487
      %vm495 = vmor %vm493, %vm494
      %v496 = vsel %vm495, %v487, %v492
      %v497 = vmul.f32 %v480, %v496
      %v499 = vperm.slane %v466, 0
      %v501 = vmul.f32 %v497, %v499
      %v503 = vperm.slane %v467, 0
      %v505 = vadd.f32 %v501, %v503
      %v506 = vpack.c.bf16 %v505, %v505
      %v507 = vld [vmem:[%s3] sm:$0xf]
      %v508 = vld [vmem:[%s3 + $0x4] sm:$0xf]
      %v509 = vld [vmem:[%s3 + $0x8] sm:$0xf]
      %v510 = vld [vmem:[%s3 + $0xc] sm:$0xf]
      %v511 = vld [vmem:[%s4] sm:$0x1]
      %v513 = vperm.slane %v511, 0
      %v519 = vunpack.c.l.b16 %v507
      %v520 = vunpack.c.l.b16 %v508
      %v521 = vunpack.c.l.b16 %v509
      %v522 = vunpack.c.l.b16 %v510
      %v523 = vpack.c.b16 %v520, %v519
      %v524 = vpack.c.b16 %v522, %v521
      %v528 = vsel %vm468, %v506, 0
      %530 = vmatpush.bf16.msra.mxu0 0
      %531 = vmatpush.bf16.msra.mxu0 0
      %532 = vmatpush.bf16.msra.mxu0 0
      %533 = vmatpush.bf16.msra.mxu0 0
      %534 = vmatpush.bf16.msra.mxu0 0
      %535 = vmatpush.bf16.msra.mxu0 0
      %536 = vmatpush.bf16.msra.mxu0 %v524
      %537 = vmatpush.bf16.msra.mxu0 %v523
      %538 = vmatmul.bf16.gmra.mxu0 %v528
      %v539 = vpop.f32.mrf.mxu0
      %v540 = vadd.f32 %v513, %v539
      %v541 = vpop.f32.mrf.mxu0
      %542 = vdwg.mxu0
      %v543 = vlaneseq
      %v544 = vshrl.u32 %v543, 7
      %v545 = vlaneseq
      %v546 = vand.u32 %v545, 127
      %vm547 = vcmp.le.s32.totalorder %v546, %v544
      %v548 = vpack.c.bf16 %v540, %v540
      %550 = vrot.lane.b32.xlu0 %v548, 96
      %v551 = vpop.permute.xlu0 %550
      %vm552 = vcmask 64512
      %v554 = vsel %vm552, %v548, 0
      %v557 = vsel %vm552, %v551, 0
      %559 = vmatpush.bf16.xpose.msra.mxu0 0
      %560 = vmatpush.bf16.xpose.msra.mxu0 0
      %561 = vmatpush.bf16.xpose.msra.mxu0 0
      %562 = vmatpush.bf16.xpose.msra.mxu0 0
      %563 = vmatpush.bf16.xpose.msra.mxu0 0
      %564 = vmatpush.bf16.xpose.msra.mxu0 0
      %565 = vmatpush.bf16.xpose.msra.mxu0 0
      %566 = vmatpush.bf16.xpose.msra.mxu0 %v557
      %567 = vmatmul.bf16.gmra.mxu0 %v554
      %v568 = vpop.f32.mrf.mxu0
      %v569 = vadd.f32 0.0, %v568
      %v570 = vpop.f32.mrf.mxu0
      %571 = vdwg.mxu0
      %v572 = vsel %vm547, %v569, -inf
      %v573 = vsel %vm552, %v572, -inf
      %574 = vmax.xlane.f32.xlu0 %v573
      %v575 = vpop.xlane.xlu0 %574
      %v576 = vsub.f32 %v572, %v575
      %v577 = vmul.f32 %v576, 1.442695
      %v578 = vpow.pop %v577
      %v579 = vsel %vm552, %v578, 0.0
      %580 = vadd.xlane.f32.xlu0 %v579
      %v581 = vpop.xlane.xlu0 %580
      %v582 = vpack.c.bf16 %v578, %v578
      %583 = vrot.lane.b32.xlu0 %v548, 64
      %v584 = vpop.permute.xlu0 %583
      %v586 = vsel %vm552, %v582, 0
      %vm588 = vcmask 1043456
      %v590 = vsel %vm588, %v584, 0
      %592 = vmatpush.bf16.msra.mxu0 0
      %593 = vmatpush.bf16.msra.mxu0 0
      %594 = vmatpush.bf16.msra.mxu0 0
      %595 = vmatpush.bf16.msra.mxu0 0
      %596 = vmatpush.bf16.msra.mxu0 0
      %597 = vmatpush.bf16.msra.mxu0 0
      %598 = vmatpush.bf16.msra.mxu0 0
      %599 = vmatpush.bf16.msra.mxu0 %v590
      %600 = vmatmul.bf16.gmra.mxu0 %v586
      %v601 = vpop.f32.mrf.mxu0
      %v602 = vadd.f32 0.0, %v601
      %v603 = vpop.f32.mrf.mxu0
      %604 = vdwg.mxu0
      %v605 = vrcp.pop %v581
      %v606 = vmul.f32 %v602, %v605
      %v607 = vpack.c.bf16 %v606, %v606
      %608 = vrot.lane.b32.xlu0 %v548, 120
      %v609 = vpop.permute.xlu0 %608
      %610 = vrot.lane.b32.xlu0 %v548, 88
      %v611 = vpop.permute.xlu0 %610
      %v613 = vsel %vm552, %v609, 0
      %v616 = vsel %vm552, %v611, 0
      %618 = vmatpush.bf16.xpose.msra.mxu0 0
      %619 = vmatpush.bf16.xpose.msra.mxu0 0
      %620 = vmatpush.bf16.xpose.msra.mxu0 0
      %621 = vmatpush.bf16.xpose.msra.mxu0 0
      %622 = vmatpush.bf16.xpose.msra.mxu0 0
      %623 = vmatpush.bf16.xpose.msra.mxu0 0
      %624 = vmatpush.bf16.xpose.msra.mxu0 0
      %625 = vmatpush.bf16.xpose.msra.mxu0 %v616
      %626 = vmatmul.bf16.gmra.mxu0 %v613
      %v627 = vpop.f32.mrf.mxu0
      %v628 = vadd.f32 0.0, %v627
      %v629 = vpop.f32.mrf.mxu0
      %630 = vdwg.mxu0
      %v631 = vsel %vm547, %v628, -inf
      %v632 = vsel %vm552, %v631, -inf
      %633 = vmax.xlane.f32.xlu0 %v632
      %v634 = vpop.xlane.xlu0 %633
      %v635 = vsub.f32 %v631, %v634
      %v636 = vmul.f32 %v635, 1.442695
      %v637 = vpow.pop %v636
      %v638 = vsel %vm552, %v637, 0.0
      %639 = vadd.xlane.f32.xlu0 %v638
      %v640 = vpop.xlane.xlu0 %639
      %v641 = vpack.c.bf16 %v637, %v637
      %642 = vrot.lane.b32.xlu0 %v548, 56
      %v643 = vpop.permute.xlu0 %642
      %v645 = vsel %vm552, %v641, 0
      %v648 = vsel %vm588, %v643, 0
      %650 = vmatpush.bf16.msra.mxu0 0
      %651 = vmatpush.bf16.msra.mxu0 0
      %652 = vmatpush.bf16.msra.mxu0 0
      %653 = vmatpush.bf16.msra.mxu0 0
      %654 = vmatpush.bf16.msra.mxu0 0
      %655 = vmatpush.bf16.msra.mxu0 0
      %656 = vmatpush.bf16.msra.mxu0 0
      %657 = vmatpush.bf16.msra.mxu0 %v648
      %658 = vmatmul.bf16.gmra.mxu0 %v645
      %v659 = vpop.f32.mrf.mxu0
      %v660 = vadd.f32 0.0, %v659
      %v661 = vpop.f32.mrf.mxu0
      %662 = vdwg.mxu0
      %v663 = vrcp.pop %v640
      %v664 = vmul.f32 %v660, %v663
      %v665 = vpack.c.bf16 %v664, %v664
      %666 = vrot.lane.b32.xlu0 %v548, 112
      %v667 = vpop.permute.xlu0 %666
      %668 = vrot.lane.b32.xlu0 %v548, 80
      %v669 = vpop.permute.xlu0 %668
      %v671 = vsel %vm552, %v667, 0
      %v674 = vsel %vm552, %v669, 0
      %676 = vmatpush.bf16.xpose.msra.mxu0 0
      %677 = vmatpush.bf16.xpose.msra.mxu0 0
      %678 = vmatpush.bf16.xpose.msra.mxu0 0
      %679 = vmatpush.bf16.xpose.msra.mxu0 0
      %680 = vmatpush.bf16.xpose.msra.mxu0 0
      %681 = vmatpush.bf16.xpose.msra.mxu0 0
      %682 = vmatpush.bf16.xpose.msra.mxu0 0
      %683 = vmatpush.bf16.xpose.msra.mxu0 %v674
      %684 = vmatmul.bf16.gmra.mxu0 %v671
      %v685 = vpop.f32.mrf.mxu0
      %v686 = vadd.f32 0.0, %v685
      %v687 = vpop.f32.mrf.mxu0
      %688 = vdwg.mxu0
      %v689 = vsel %vm547, %v686, -inf
      %v690 = vsel %vm552, %v689, -inf
      %691 = vmax.xlane.f32.xlu0 %v690
      %v692 = vpop.xlane.xlu0 %691
      %v693 = vsub.f32 %v689, %v692
      %v694 = vmul.f32 %v693, 1.442695
      %v695 = vpow.pop %v694
      %v696 = vsel %vm552, %v695, 0.0
      %697 = vadd.xlane.f32.xlu0 %v696
      %v698 = vpop.xlane.xlu0 %697
      %v699 = vpack.c.bf16 %v695, %v695
      %700 = vrot.lane.b32.xlu0 %v548, 48
      %v701 = vpop.permute.xlu0 %700
      %v703 = vsel %vm552, %v699, 0
      %v706 = vsel %vm588, %v701, 0
      %708 = vmatpush.bf16.msra.mxu0 0
      %709 = vmatpush.bf16.msra.mxu0 0
      %710 = vmatpush.bf16.msra.mxu0 0
      %711 = vmatpush.bf16.msra.mxu0 0
      %712 = vmatpush.bf16.msra.mxu0 0
      %713 = vmatpush.bf16.msra.mxu0 0
      %714 = vmatpush.bf16.msra.mxu0 0
      %715 = vmatpush.bf16.msra.mxu0 %v706
      %716 = vmatmul.bf16.gmra.mxu0 %v703
      %v717 = vpop.f32.mrf.mxu0
      %v718 = vadd.f32 0.0, %v717
      %v719 = vpop.f32.mrf.mxu0
      %720 = vdwg.mxu0
      %v721 = vrcp.pop %v698
      %v722 = vmul.f32 %v718, %v721
      %v723 = vpack.c.bf16 %v722, %v722
      %724 = vrot.lane.b32.xlu0 %v548, 104
      %v725 = vpop.permute.xlu0 %724
      %726 = vrot.lane.b32.xlu0 %v548, 72
      %v727 = vpop.permute.xlu0 %726
      %v729 = vsel %vm552, %v725, 0
      %v732 = vsel %vm552, %v727, 0
      %734 = vmatpush.bf16.xpose.msra.mxu0 0
      %735 = vmatpush.bf16.xpose.msra.mxu0 0
      %736 = vmatpush.bf16.xpose.msra.mxu0 0
      %737 = vmatpush.bf16.xpose.msra.mxu0 0
      %738 = vmatpush.bf16.xpose.msra.mxu0 0
      %739 = vmatpush.bf16.xpose.msra.mxu0 0
      %740 = vmatpush.bf16.xpose.msra.mxu0 0
      %741 = vmatpush.bf16.xpose.msra.mxu0 %v732
      %742 = vmatmul.bf16.gmra.mxu0 %v729
      %v743 = vpop.f32.mrf.mxu0
      %v744 = vadd.f32 0.0, %v743
      %v745 = vpop.f32.mrf.mxu0
      %746 = vdwg.mxu0
      %v747 = vsel %vm547, %v744, -inf
      %v748 = vsel %vm552, %v747, -inf
      %749 = vmax.xlane.f32.xlu0 %v748
      %v750 = vpop.xlane.xlu0 %749
      %v751 = vsub.f32 %v747, %v750
      %v752 = vmul.f32 %v751, 1.442695
      %v753 = vpow.pop %v752
      %v754 = vsel %vm552, %v753, 0.0
      %755 = vadd.xlane.f32.xlu0 %v754
      %v756 = vpop.xlane.xlu0 %755
      %v757 = vpack.c.bf16 %v753, %v753
      %758 = vrot.lane.b32.xlu0 %v548, 40
      %v759 = vpop.permute.xlu0 %758
      %v761 = vsel %vm552, %v757, 0
      %v764 = vsel %vm588, %v759, 0
      %766 = vmatpush.bf16.msra.mxu0 0
      %767 = vmatpush.bf16.msra.mxu0 0
      %768 = vmatpush.bf16.msra.mxu0 0
      %769 = vmatpush.bf16.msra.mxu0 0
      %770 = vmatpush.bf16.msra.mxu0 0
      %771 = vmatpush.bf16.msra.mxu0 0
      %772 = vmatpush.bf16.msra.mxu0 0
      %773 = vmatpush.bf16.msra.mxu0 %v764
      %774 = vmatmul.bf16.gmra.mxu0 %v761
      %v775 = vpop.f32.mrf.mxu0
      %v776 = vadd.f32 0.0, %v775
      %v777 = vpop.f32.mrf.mxu0
      %778 = vdwg.mxu0
      %v779 = vrcp.pop %v756
      %v780 = vmul.f32 %v776, %v779
      %v781 = vpack.c.bf16 %v780, %v780
      %v783 = vunpack.c.l.b16 %v665
      %v784 = vpack.c.b16 %v783, %v783
      %785 = vrot.lane.b32.xlu0 %v784, 8
      %v786 = vpop.permute.xlu0 %785
      %v788 = vunpack.c.l.b16 %v723
      %v789 = vpack.c.b16 %v788, %v788
      %790 = vrot.lane.b32.xlu0 %v789, 16
      %v791 = vpop.permute.xlu0 %790
      %v793 = vunpack.c.l.b16 %v781
      %v794 = vpack.c.b16 %v793, %v793
      %795 = vrot.lane.b32.xlu0 %v794, 24
      %v796 = vpop.permute.xlu0 %795
      %v799 = vsel %vm552, %v607, %v786
      %vm800 = vcmask 130048
      %v802 = vsel %vm800, %v799, %v791
      %vm803 = vcmask 195584
      %v805 = vsel %vm803, %v802, %v796
      %v806 = vld [vmem:[%s5] sm:$0xf]
      %v807 = vld [vmem:[%s5 + $0x4] sm:$0xf]
      %v808 = vld [vmem:[%s5 + $0x8] sm:$0xf]
      %v809 = vld [vmem:[%s5 + $0xc] sm:$0xf]
      %v814 = vunpack.c.l.b16 %v806
      %v815 = vunpack.c.l.b16 %v807
      %v816 = vunpack.c.l.b16 %v808
      %v817 = vunpack.c.l.b16 %v809
      %v818 = vpack.c.b16 %v815, %v814
      %v819 = vpack.c.b16 %v817, %v816
      %v822 = vsel %vm468, %v805, 0
      %824 = vmatpush.bf16.msra.mxu0 0
      %825 = vmatpush.bf16.msra.mxu0 0
      %826 = vmatpush.bf16.msra.mxu0 0
      %827 = vmatpush.bf16.msra.mxu0 0
      %828 = vmatpush.bf16.msra.mxu0 0
      %829 = vmatpush.bf16.msra.mxu0 0
      %830 = vmatpush.bf16.msra.mxu0 %v819
      %831 = vmatpush.bf16.msra.mxu0 %v818
      %832 = vmatmul.bf16.gmra.mxu0 %v822
      %v833 = vpop.f32.mrf.mxu0
      %v834 = vadd.f32 0.0, %v833
      %v835 = vpop.f32.mrf.mxu0
      %836 = vdwg.mxu0
      %v837 = vadd.f32 %v465, %v834
      %v838 = vld [vmem:[%s6] sm:$0x1]
      %v840 = vperm.slane %v838, 0
      %v842 = vadd.f32 %v837, %v840
      %v843 = vld [vmem:[%s7] sm:$0x1]
      %v845 = vperm.slane %v843, 0
      %v847 = vadd.f32 %v842, %v845
      %v848 = vld [vmem:[%s8] sm:$0x1]
      %v849 = vld [vmem:[%s9] sm:$0x1]
      %v850 = vsel %vm468, %v847, 0.0
      %851 = vadd.xlane.f32.xlu0 %v850
      %v852 = vpop.xlane.xlu0 %851
      %v853 = vmul.f32 %v852, %v478
      %v854 = vsub.f32 %v847, %v853
      %v855 = vmul.f32 %v854, %v854
      %v856 = vsel %vm468, %v855, 0.0
      %857 = vadd.xlane.f32.xlu0 %v856
      %v858 = vpop.xlane.xlu0 %857
      %v859 = vmul.f32 %v858, %v478
      %v860 = vadd.f32 %v859, 1e-05
      %v861 = vrsqrt.pop %v860
      %v862 = vmul.f32 %v861, %v860
      %v863 = vmul.f32 %v862, %v861
      %v864 = vmul.f32 0.5, %v863
      %v865 = vsub.f32 1.5, %v864
      %v866 = vmul.f32 %v861, %v865
      %vm867 = vweird.f32 %v860
      %vm868 = vweird.f32 %v861
      %vm869 = vmor %vm867, %vm868
      %v870 = vsel %vm869, %v861, %v866
      %v871 = vmul.f32 %v854, %v870
      %v873 = vperm.slane %v848, 0
      %v875 = vmul.f32 %v871, %v873
      %v877 = vperm.slane %v849, 0
      %v879 = vadd.f32 %v875, %v877
      %v880 = vpack.c.bf16 %v879, %v879
      %v881 = vld [vmem:[%s10] sm:$0xf]
      %v882 = vld [vmem:[%s10 + $0x4] sm:$0xf]
      %v883 = vld [vmem:[%s10 + $0x8] sm:$0xf]
      %v884 = vld [vmem:[%s10 + $0xc] sm:$0xf]
      %v885 = vld [vmem:[%s11] sm:$0x1]
      %v887 = vperm.slane %v885, 0
      %v893 = vunpack.c.l.b16 %v881
      %v894 = vunpack.c.l.b16 %v882
      %v895 = vunpack.c.l.b16 %v883
      %v896 = vunpack.c.l.b16 %v884
      %v897 = vpack.c.b16 %v894, %v893
      %v898 = vpack.c.b16 %v896, %v895
      %v902 = vsel %vm468, %v880, 0
      %904 = vmatpush.bf16.msra.mxu0 0
      %905 = vmatpush.bf16.msra.mxu0 0
      %906 = vmatpush.bf16.msra.mxu0 0
      %907 = vmatpush.bf16.msra.mxu0 0
      %908 = vmatpush.bf16.msra.mxu0 0
      %909 = vmatpush.bf16.msra.mxu0 0
      %910 = vmatpush.bf16.msra.mxu0 %v898
      %911 = vmatpush.bf16.msra.mxu0 %v897
      %912 = vmatmul.bf16.gmra.mxu0 %v902
      %v913 = vpop.f32.mrf.mxu0
      %v914 = vadd.f32 %v887, %v913
      %v915 = vpop.f32.mrf.mxu0
      %916 = vdwg.mxu0
      %v917 = vmul.f32 %v914, 0.5
      %v918 = vmul.f32 %v914, 0.044715
      %v919 = vmul.f32 %v918, %v914
      %v920 = vmul.f32 %v919, %v914
      %v921 = vadd.f32 %v914, %v920
      %v922 = vmul.f32 %v921, 0.7978846
      %v923 = vtanh.pop %v922
      %v924 = vadd.f32 %v923, 1.0
      %v925 = vmul.f32 %v917, %v924
      %v926 = vpack.c.bf16 %v925, %v925
      %v927 = vld [vmem:[%s12] sm:$0xf]
      %v928 = vld [vmem:[%s12 + $0x4] sm:$0xf]
      %v929 = vld [vmem:[%s12 + $0x8] sm:$0xf]
      %v930 = vld [vmem:[%s12 + $0xc] sm:$0xf]
      %v931 = vld [vmem:[%s12 + $0x10] sm:$0xf]
      %v932 = vld [vmem:[%s12 + $0x14] sm:$0xf]
      %v933 = vld [vmem:[%s12 + $0x18] sm:$0xf]
      %v934 = vld [vmem:[%s12 + $0x1c] sm:$0xf]
      %v935 = vld [vmem:[%s12 + $0x20] sm:$0xf]
      %v936 = vld [vmem:[%s12 + $0x24] sm:$0xf]
      %v937 = vld [vmem:[%s12 + $0x28] sm:$0xf]
      %v938 = vld [vmem:[%s12 + $0x2c] sm:$0xf]
      %v939 = vld [vmem:[%s12 + $0x30] sm:$0xf]
      %v940 = vld [vmem:[%s12 + $0x34] sm:$0xf]
      %v941 = vld [vmem:[%s12 + $0x38] sm:$0xf]
      %v942 = vld [vmem:[%s12 + $0x3c] sm:$0xf]
      %v943 = vld [vmem:[%s13] sm:$0x1]
      %v945 = vperm.slane %v943, 0
      %v963 = vunpack.c.l.b16 %v927
      %v964 = vunpack.c.l.b16 %v928
      %v965 = vunpack.c.l.b16 %v929
      %v966 = vunpack.c.l.b16 %v930
      %v967 = vunpack.c.l.b16 %v931
      %v968 = vunpack.c.l.b16 %v932
      %v969 = vunpack.c.l.b16 %v933
      %v970 = vunpack.c.l.b16 %v934
      %v971 = vunpack.c.l.b16 %v935
      %v972 = vunpack.c.l.b16 %v936
      %v973 = vunpack.c.l.b16 %v937
      %v974 = vunpack.c.l.b16 %v938
      %v975 = vunpack.c.l.b16 %v939
      %v976 = vunpack.c.l.b16 %v940
      %v977 = vunpack.c.l.b16 %v941
      %v978 = vunpack.c.l.b16 %v942
      %v979 = vpack.c.b16 %v964, %v963
      %v980 = vpack.c.b16 %v966, %v965
      %v981 = vpack.c.b16 %v968, %v967
      %v982 = vpack.c.b16 %v970, %v969
      %v983 = vpack.c.b16 %v972, %v971
      %v984 = vpack.c.b16 %v974, %v973
      %v985 = vpack.c.b16 %v976, %v975
      %v986 = vpack.c.b16 %v978, %v977
      %995 = vmatpush.bf16.msra.mxu0 %v986
      %996 = vmatpush.bf16.msra.mxu0 %v985
      %997 = vmatpush.bf16.msra.mxu0 %v984
      %998 = vmatpush.bf16.msra.mxu0 %v983
      %999 = vmatpush.bf16.msra.mxu0 %v982
      %1000 = vmatpush.bf16.msra.mxu0 %v981
      %1001 = vmatpush.bf16.msra.mxu0 %v980
      %1002 = vmatpush.bf16.msra.mxu0 %v979
      %1003 = vmatmul.bf16.gmra.mxu0 %v926
      %v1004 = vpop.f32.mrf.mxu0
      %v1005 = vadd.f32 %v945, %v1004
      %v1006 = vpop.f32.mrf.mxu0
      %1007 = vdwg.mxu0
      %v1008 = vadd.f32 %v847, %v1005
      %v1009 = vpack.c.bf16 %v1008, %v1008
      %vm1010 = vcmask 257024
      %1011 = vst.msk [vmem:[%s462] sm:$0xf] %vm1010, %v1009
      %p1012 = scmp.lt.s32.totalorder %s25, 1
      %s1013 = scalar_select %p1012, %s25, 1
      %s1014 = smul.addr %s1013, 4
      %s1015 = scalar_lea.vmem %s14, %s1014
      // Predicated region
      $region77: #{_forward.3} parent=75 // pred_check
        %p1016 = pneg %p342
      $region78: #{_forward.3} parent=75 // pred_check_branch
        %1018 = sbr.rel (%p1016) target = $region80
      $region79: #{_forward.3} parent=75 // pred_region
        _
      $region80: #{_forward.3} parent=75 // pred_fallthru
        _
    $region76: #{_forward.3} parent=5 // pred_fallthru
      _
    %p1019 = scmp.le.s32.totalorder 2, %s20
    // Predicated region
    $region81: #{_forward.3} parent=5 // pred_check
      %p1020 = pneg %p1019
    $region82: #{_forward.3} parent=5 // pred_check_branch
      %1022 = sbr.rel (%p1020) target = $region84
    $region83: #{_forward.3} parent=5 // pred_region
      %s1023 = ssub.s32 %s20, 2
      // Predicated region
      $region85: #{_forward.3} parent=83 // pred_check
        %p1024 = pneg %p348
      $region86: #{_forward.3} parent=83 // pred_check_branch
        %1026 = sbr.rel (%p1024) target = $region88
      $region87: #{_forward.3} parent=83 // pred_region
        %p1027 = scmp.lt.s32.totalorder %s26, 1
        %s1028 = scalar_select %p1027, %s26, 1
        %s1029 = smul.addr %s1028, 4
        %s1030 = scalar_lea.vmem %s14, %s1029
      $region88: #{_forward.3} parent=83 // pred_fallthru
        _
    $region84: #{_forward.3} parent=5 // pred_fallthru
      _
  $region6: #{_forward.3} parent=0 // loop_footer
    %s24 = sadd.s32 1, %s20
  $region7: #{_forward.3} parent=0 // loop_footer_branch
    %19 = sbr.rel target = $region3
  $region8: #{_forward.3} parent=0 // loop_exit
    _

</llo_original>
